<compile_context>
chip_gen: v7x
topology: tpu7x:2x2x1
jax: 0.10.0
libtpu: 0.0.40
codegen_flags: <defaults>
</compile_context>

<pallas_src>
import functools

import jax
import jax.numpy as jnp
from jax import lax
from jax.experimental import pallas as pl
from jax.experimental.pallas import tpu as pltpu


def mha_fused_kernel(x_ref, wqkv_ref, wproj_ref, bias_ref, o_ref,
                     k_scratch, v_scratch, *, n_heads, d_att, scale,
                     approx_recip):
    """Grid = (batch, query_tile).

    x_ref     : (1, S, Dm)            VMEM (same block for every query tile)
    wqkv_ref  : (3*d_att, Dm)         VMEM, PyTorch (out, in) layout
    wproj_ref : (d_out, d_att)        VMEM, PyTorch (out, in) layout
    bias_ref  : (1, d_out)            VMEM, f32
    o_ref     : (1, tq, d_out)        VMEM
    k_scratch : (d_att, S)            VMEM, persists across query tiles
    v_scratch : (d_att, S)            VMEM, persists across query tiles
    """
    cdt = k_scratch.dtype              # MXU-input dtype (f32 or bf16)
    dh = d_att // n_heads
    tq = o_ref.shape[1]                # query-tile length
    qi = pl.program_id(1)

    # ---- K / V projection: once per batch element, cached across query tiles.
    @pl.when(qi == 0)
    def _():
        xf = x_ref[0]                                          # (S, Dm)
        wk = wqkv_ref[d_att:2 * d_att, :]                      # (d_att, Dm)
        wv = wqkv_ref[2 * d_att:3 * d_att, :]                  # (d_att, Dm)
        # K[f, s] = sum_m wk[f, m] * x[s, m]  (contract in_features directly)
        k_scratch[...] = lax.dot_general(
            wk, xf, (((1,), (1,)), ((), ())),
            preferred_element_type=jnp.float32).astype(cdt)    # (d_att, S)
        v_scratch[...] = lax.dot_general(
            wv, xf, (((1,), (1,)), ((), ())),
            preferred_element_type=jnp.float32).astype(cdt)    # (d_att, S)

    # ---- Q projection for this query tile; 1/sqrt(dh) folded into Q once.
    start = pl.multiple_of(qi * tq, tq)
    xq = x_ref[0, pl.ds(start, tq), :]                         # (tq, Dm)
    wq = wqkv_ref[0:d_att, :]                                  # (d_att, Dm)
    q = lax.dot_general(wq, xq, (((1,), (1,)), ((), ())),
                        preferred_element_type=jnp.float32)    # (d_att, tq)
    q = (q * scale).astype(cdt)

    k = k_scratch[...]                                         # (d_att, S)
    v = v_scratch[...]                                         # (d_att, S)

    # ---- Attention.  Heads are dh-row groups along the sublane axis, so each
    # per-head operand is lane-dense (lanes = tq or S).  The Python loop is
    # unrolled at trace time; with no VMEM round-trip between heads the MXU
    # pushes of consecutive heads can be pipelined back to back.
    # TODO(synk): boolean attention mask (attn[~mask] = -1e9) not wired in;
    # only the mask=None path is implemented.
    ctx_heads = []
    for h in range(n_heads):
        r0 = h * dh
        qh = q[r0:r0 + dh, :]                                  # (dh, tq)
        kh = k[r0:r0 + dh, :]                                  # (dh, S)
        vh = v[r0:r0 + dh, :]                                  # (dh, S)

        # scores[t, s] = sum_d qh[d, t] * kh[d, s]   (no transpose materialized)
        scores = lax.dot_general(qh, kh, (((0,), (0,)), ((), ())),
                                 preferred_element_type=jnp.float32)  # (tq, S)

        # softmax over the key (lane) axis, f32 math.
        m = jnp.max(scores, axis=-1, keepdims=True)
        p = jnp.exp(scores - m)
        denom = jnp.sum(p, axis=-1, keepdims=True)
        probs = p * pl.reciprocal(denom, approx=approx_recip)

        # ctx[d, t] = sum_s vh[d, s] * probs[t, s]
        ctx_heads.append(
            lax.dot_general(vh, probs.astype(cdt), (((1,), (1,)), ((), ())),
                            preferred_element_type=jnp.float32).astype(cdt))

    # Head-major feature rows (h, d) -> (d_att, tq): matches 'b t h d -> b t (h d)'.
    ctx = jnp.concatenate(ctx_heads, axis=0)                   # (d_att, tq)

    # ---- Output projection (PyTorch (d_out, d_att) layout) + bias.
    # y[t, o] = sum_f ctx[f, t] * wproj[o, f]
    y = lax.dot_general(ctx, wproj_ref[...], (((0,), (1,)), ((), ())),
                        preferred_element_type=jnp.float32)    # (tq, d_out)
    y = y + bias_ref[...]                                      # (1, d_out) broadcast
    o_ref[0] = y.astype(o_ref.dtype)


def mha_fused(x, w_qkv, w_proj, b_proj, *, n_heads, q_block=256):
    """x: (B, S, d_model); w_qkv: (3*d_att, d_model); w_proj: (d_out, d_att);
    b_proj: (d_out,).  Weights stay in PyTorch (out, in) layout (no transpose).
    Pass bf16 x / weights for the bf16 MXU path.  Returns (B, S, d_out)."""
    B, S, Dm = x.shape
    three_datt = w_qkv.shape[0]
    d_att = three_datt // 3
    d_out = w_proj.shape[0]
    assert w_qkv.shape[1] == Dm and w_proj.shape[1] == d_att
    assert d_att % n_heads == 0
    dh = d_att // n_heads
    scale = float(dh) ** (-0.5)

    # Query-tile size: full S for short sequences, otherwise q_block rows.
    # TODO(synk): for very long S also tile the key/value axis with an
    # online-softmax (flash) accumulator instead of full-S scores per tile.
    tq = q_block if (S > q_block and S % q_block == 0) else S
    n_q = S // tq

    cdt = x.dtype
    bias2 = b_proj.reshape(1, d_out).astype(jnp.float32)

    kernel = functools.partial(
        mha_fused_kernel, n_heads=n_heads, d_att=d_att, scale=scale,
        approx_recip=bool(cdt == jnp.bfloat16))

    return pl.pallas_call(
        kernel,
        out_shape=jax.ShapeDtypeStruct((B, S, d_out), x.dtype),
        grid=(B, n_q),
        in_specs=[
            pl.BlockSpec((1, S, Dm), lambda b, q: (b, 0, 0)),        # x (per batch)
            pl.BlockSpec((three_datt, Dm), lambda b, q: (0, 0)),     # W_qkv (out,in)
            pl.BlockSpec((d_out, d_att), lambda b, q: (0, 0)),       # W_proj (out,in)
            pl.BlockSpec((1, d_out), lambda b, q: (0, 0)),           # proj bias
        ],
        out_specs=pl.BlockSpec((1, tq, d_out), lambda b, q: (b, q, 0)),
        scratch_shapes=[pltpu.VMEM((d_att, S), cdt),                 # K cache
                        pltpu.VMEM((d_att, S), cdt)],                # V cache
        compiler_params=pltpu.CompilerParams(
            dimension_semantics=("parallel", "arbitrary"),
            vmem_limit_bytes=64 * 1024 * 1024),
    )(x, w_qkv, w_proj, bias2)


def mha_fused_reference(x, w_qkv, w_proj, b_proj, n_heads):
    """Pure-JAX reference mirroring the PyTorch forward (eval mode, mask=None)."""
    B, S, Dm = x.shape
    d_att = w_qkv.shape[0] // 3
    dh = d_att // n_heads
    qkv = jnp.einsum('bsd,ed->bse', x, w_qkv)              # (B, S, 3*d_att)
    qkv = qkv.reshape(B, S, 3, n_heads, dh)
    q, k, v = qkv[:, :, 0], qkv[:, :, 1], qkv[:, :, 2]
    attn = jnp.einsum('bshd,bthd->bsht', q, k) * (dh ** -0.5)
    attn = jax.nn.softmax(attn, axis=-1)
    ret = jnp.einsum('bsht,bthd->bshd', attn, v)           # (B, S, H, dh)
    ret = ret.reshape(B, S, d_att)
    return jnp.einsum('bsd,od->bso', ret, w_proj) + b_proj


if __name__ == "__main__":
    key = jax.random.PRNGKey(0)

    # ---------- small demo shapes (single query tile) ----------
    B, S, D_MODEL = 2, 8, 32
    N_HEADS, D_ATT, D_OUT = 4, 32, 16

    kx, kqkv, kproj, kb = jax.random.split(key, 4)
    x = jax.random.normal(kx, (B, S, D_MODEL), dtype=jnp.float32)
    w_qkv = 0.02 * jax.random.normal(kqkv, (3 * D_ATT, D_MODEL), dtype=jnp.float32)
    w_proj = 0.02 * jax.random.normal(kproj, (D_OUT, D_ATT), dtype=jnp.float32)
    b_proj = 0.02 * jax.random.normal(kb, (D_OUT,), dtype=jnp.float32)

    ref = mha_fused_reference(x, w_qkv, w_proj, b_proj, N_HEADS)

    out = jax.block_until_ready(mha_fused(x, w_qkv, w_proj, b_proj, n_heads=N_HEADS))
    assert out.shape == (B, S, D_OUT)
    assert jnp.allclose(out, ref, atol=1e-4, rtol=2e-2), "f32 kernel mismatch"

    # bf16 MXU-input path (halved VMEM/HBM footprint, ~2x MXU throughput).
    out_bf16 = jax.block_until_ready(
        mha_fused(x.astype(jnp.bfloat16), w_qkv.astype(jnp.bfloat16),
                  w_proj.astype(jnp.bfloat16), b_proj, n_heads=N_HEADS))
    assert jnp.allclose(out_bf16.astype(jnp.float32), ref,
                        atol=5e-3, rtol=1e-1), "bf16 kernel mismatch"

    # ---------- lane-dense shapes exercising the query-tile grid axis ----------
    B2, S2, DM2 = 2, 256, 128
    H2, DATT2, DOUT2 = 2, 128, 128
    k2x, k2q, k2p, k2b = jax.random.split(jax.random.PRNGKey(1), 4)
    x2 = jax.random.normal(k2x, (B2, S2, DM2), dtype=jnp.float32)
    wq2 = 0.02 * jax.random.normal(k2q, (3 * DATT2, DM2), dtype=jnp.float32)
    wp2 = 0.02 * jax.random.normal(k2p, (DOUT2, DATT2), dtype=jnp.float32)
    bp2 = 0.02 * jax.random.normal(k2b, (DOUT2,), dtype=jnp.float32)

    ref2 = mha_fused_reference(x2, wq2, wp2, bp2, H2)
    out2 = jax.block_until_ready(
        mha_fused(x2, wq2, wp2, bp2, n_heads=H2, q_block=128))   # 2 query tiles
    assert out2.shape == (B2, S2, DOUT2)
    assert jnp.allclose(out2, ref2, atol=2e-4, rtol=2e-2), "tiled kernel mismatch"

    print("KERNEL_OK")
</pallas_src>

<mosaic_0001>
module attributes {stable_mosaic.version = 11 : i64} {
  func.func @mha_fused_kernel(%arg0: i32, %arg1: i32, %arg2: memref<1x8x32xf32, #tpu.memory_space<vmem>>, %arg3: memref<96x32xf32, #tpu.memory_space<vmem>>, %arg4: memref<16x32xf32, #tpu.memory_space<vmem>>, %arg5: memref<1x16xf32, #tpu.memory_space<vmem>>, %arg6: memref<1x8x16xf32, #tpu.memory_space<vmem>>, %arg7: memref<32x8xf32, #tpu.memory_space<vmem>>, %arg8: memref<32x8xf32, #tpu.memory_space<vmem>>) attributes {dimension_semantics = [#tpu.dimension_semantics<parallel>, #tpu.dimension_semantics<arbitrary>], iteration_bounds = array<i64: 2, 1>, scalar_prefetch = 0 : i64, scratch_operands = 2 : i64, tpu.core_type = #tpu.core_type<tc>, window_params = [{transform_indices = @transform_0, window_bounds = array<i64: 1, 8, 32>}, {pipeline_mode = #tpu.pipeline_mode<synchronous>, transform_indices = @transform_1, window_bounds = array<i64: 96, 32>}, {pipeline_mode = #tpu.pipeline_mode<synchronous>, transform_indices = @transform_2, window_bounds = array<i64: 16, 32>}, {pipeline_mode = #tpu.pipeline_mode<synchronous>, transform_indices = @transform_3, window_bounds = array<i64: 1, 16>}, {transform_indices = @transform_4, window_bounds = array<i64: 1, 8, 16>}]} {
    %c0_i32 = arith.constant 0 : i32
    %0 = arith.cmpi eq, %arg1, %c0_i32 : i32
    %1 = arith.extui %0 : i1 to i32
    %c0_i32_0 = arith.constant 0 : i32
    %2 = arith.cmpi ne, %1, %c0_i32_0 : i32
    scf.if %2 {
      %c0_33 = arith.constant 0 : index
      %c0_34 = arith.constant 0 : index
      %c0_35 = arith.constant 0 : index
      %83 = vector.load %arg2[%c0_33, %c0_34, %c0_35] : memref<1x8x32xf32, #tpu.memory_space<vmem>>, vector<1x8x32xf32>
      %84 = vector.shape_cast %83 : vector<1x8x32xf32> to vector<8x32xf32>
      %c32 = arith.constant 32 : index
      %c0_36 = arith.constant 0 : index
      %85 = vector.load %arg3[%c32, %c0_36] : memref<96x32xf32, #tpu.memory_space<vmem>>, vector<32x32xf32>
      %c64 = arith.constant 64 : index
      %c0_37 = arith.constant 0 : index
      %86 = vector.load %arg3[%c64, %c0_37] : memref<96x32xf32, #tpu.memory_space<vmem>>, vector<32x32xf32>
      %cst_38 = arith.constant dense<0.000000e+00> : vector<32x8xf32>
      %87 = tpu.matmul %85, %84, %cst_38 {dimension_numbers = #tpu.dot_dimension_numbers<[1], [1], [0], [0], [0, 0, 1, 0], [], []>} : vector<32x32xf32>, vector<8x32xf32>, vector<32x8xf32> -> vector<32x8xf32>
      %c0_39 = arith.constant 0 : index
      %c0_40 = arith.constant 0 : index
      %88 = vector.load %arg7[%c0_39, %c0_40] : memref<32x8xf32, #tpu.memory_space<vmem>>, vector<32x8xf32>
      tpu.vector_store %arg7[%c0_39, %c0_40], %87 {strides = array<i32>} : memref<32x8xf32, #tpu.memory_space<vmem>>, vector<32x8xf32>,
      %cst_41 = arith.constant dense<0.000000e+00> : vector<32x8xf32>
      %89 = tpu.matmul %86, %84, %cst_41 {dimension_numbers = #tpu.dot_dimension_numbers<[1], [1], [0], [0], [0, 0, 1, 0], [], []>} : vector<32x32xf32>, vector<8x32xf32>, vector<32x8xf32> -> vector<32x8xf32>
      %c0_42 = arith.constant 0 : index
      %c0_43 = arith.constant 0 : index
      %90 = vector.load %arg8[%c0_42, %c0_43] : memref<32x8xf32, #tpu.memory_space<vmem>>, vector<32x8xf32>
      tpu.vector_store %arg8[%c0_42, %c0_43], %89 {strides = array<i32>} : memref<32x8xf32, #tpu.memory_space<vmem>>, vector<32x8xf32>,
    } else {
    }
    %c8_i32 = arith.constant 8 : i32
    %3 = arith.muli %arg1, %c8_i32 : i32
    %4 = tpu.assume_multiple %3, 8 : i32
    %c0 = arith.constant 0 : index
    %5 = arith.index_cast %4 : i32 to index
    %c0_1 = arith.constant 0 : index
    %6 = vector.load %arg2[%c0, %5, %c0_1] : memref<1x8x32xf32, #tpu.memory_space<vmem>>, vector<1x8x32xf32>
    %7 = vector.shape_cast %6 : vector<1x8x32xf32> to vector<8x32xf32>
    %c0_2 = arith.constant 0 : index
    %c0_3 = arith.constant 0 : index
    %8 = vector.load %arg3[%c0_2, %c0_3] : memref<96x32xf32, #tpu.memory_space<vmem>>, vector<32x32xf32>
    %cst = arith.constant dense<0.000000e+00> : vector<32x8xf32>
    %9 = tpu.matmul %8, %7, %cst {dimension_numbers = #tpu.dot_dimension_numbers<[1], [1], [0], [0], [0, 0, 1, 0], [], []>} : vector<32x32xf32>, vector<8x32xf32>, vector<32x8xf32> -> vector<32x8xf32>
    %cst_4 = arith.constant 0.353553385 : f32
    %10 = vector.broadcast %cst_4 : f32 to vector<32x8xf32>
    %11 = arith.mulf %9, %10 : vector<32x8xf32>
    %c0_5 = arith.constant 0 : index
    %c0_6 = arith.constant 0 : index
    %12 = vector.load %arg7[%c0_5, %c0_6] : memref<32x8xf32, #tpu.memory_space<vmem>>, vector<32x8xf32>
    %c0_7 = arith.constant 0 : index
    %c0_8 = arith.constant 0 : index
    %13 = vector.load %arg8[%c0_7, %c0_8] : memref<32x8xf32, #tpu.memory_space<vmem>>, vector<32x8xf32>
    %14 = vector.extract_strided_slice %11 {offsets = [0, 0], sizes = [8, 8], strides = [1, 1]} : vector<32x8xf32> to vector<8x8xf32>
    %15 = vector.extract_strided_slice %12 {offsets = [0, 0], sizes = [8, 8], strides = [1, 1]} : vector<32x8xf32> to vector<8x8xf32>
    %16 = vector.extract_strided_slice %13 {offsets = [0, 0], sizes = [8, 8], strides = [1, 1]} : vector<32x8xf32> to vector<8x8xf32>
    %cst_9 = arith.constant dense<0.000000e+00> : vector<8x8xf32>
    %17 = tpu.matmul %14, %15, %cst_9 {dimension_numbers = #tpu.dot_dimension_numbers<[0], [0], [1], [1], [0, 1, 1, 1], [], []>} : vector<8x8xf32>, vector<8x8xf32>, vector<8x8xf32> -> vector<8x8xf32>
    %cst_10 = arith.constant dense<0xFF800000> : vector<8xf32>
    %18 = vector.multi_reduction <maximumf>, %17, %cst_10 [1] : vector<8x8xf32> to vector<8xf32>
    %19 = vector.shape_cast %18 : vector<8xf32> to vector<8x1xf32>
    %20 = vector.broadcast %19 : vector<8x1xf32> to vector<8x8xf32>
    %21 = arith.subf %17, %20 : vector<8x8xf32>
    %22 = math.exp %21 : vector<8x8xf32>
    %cst_11 = arith.constant dense<0.000000e+00> : vector<8xf32>
    %23 = vector.multi_reduction <add>, %22, %cst_11 [1] : vector<8x8xf32> to vector<8xf32>
    %24 = vector.shape_cast %23 : vector<8xf32> to vector<8x1xf32>
    %25 = tpu.reciprocal %24 : vector<8x1xf32> -> vector<8x1xf32>
    %26 = vector.broadcast %25 : vector<8x1xf32> to vector<8x8xf32>
    %27 = arith.mulf %22, %26 : vector<8x8xf32>
    %cst_12 = arith.constant dense<0.000000e+00> : vector<8x8xf32>
    %28 = tpu.matmul %16, %27, %cst_12 {dimension_numbers = #tpu.dot_dimension_numbers<[1], [1], [0], [0], [0, 0, 1, 0], [], []>} : vector<8x8xf32>, vector<8x8xf32>, vector<8x8xf32> -> vector<8x8xf32>
    %29 = vector.extract_strided_slice %11 {offsets = [8, 0], sizes = [8, 8], strides = [1, 1]} : vector<32x8xf32> to vector<8x8xf32>
    %30 = vector.extract_strided_slice %12 {offsets = [8, 0], sizes = [8, 8], strides = [1, 1]} : vector<32x8xf32> to vector<8x8xf32>
    %31 = vector.extract_strided_slice %13 {offsets = [8, 0], sizes = [8, 8], strides = [1, 1]} : vector<32x8xf32> to vector<8x8xf32>
    %cst_13 = arith.constant dense<0.000000e+00> : vector<8x8xf32>
    %32 = tpu.matmul %29, %30, %cst_13 {dimension_numbers = #tpu.dot_dimension_numbers<[0], [0], [1], [1], [0, 1, 1, 1], [], []>} : vector<8x8xf32>, vector<8x8xf32>, vector<8x8xf32> -> vector<8x8xf32>
    %cst_14 = arith.constant dense<0xFF800000> : vector<8xf32>
    %33 = vector.multi_reduction <maximumf>, %32, %cst_14 [1] : vector<8x8xf32> to vector<8xf32>
    %34 = vector.shape_cast %33 : vector<8xf32> to vector<8x1xf32>
    %35 = vector.broadcast %34 : vector<8x1xf32> to vector<8x8xf32>
    %36 = arith.subf %32, %35 : vector<8x8xf32>
    %37 = math.exp %36 : vector<8x8xf32>
    %cst_15 = arith.constant dense<0.000000e+00> : vector<8xf32>
    %38 = vector.multi_reduction <add>, %37, %cst_15 [1] : vector<8x8xf32> to vector<8xf32>
    %39 = vector.shape_cast %38 : vector<8xf32> to vector<8x1xf32>
    %40 = tpu.reciprocal %39 : vector<8x1xf32> -> vector<8x1xf32>
    %41 = vector.broadcast %40 : vector<8x1xf32> to vector<8x8xf32>
    %42 = arith.mulf %37, %41 : vector<8x8xf32>
    %cst_16 = arith.constant dense<0.000000e+00> : vector<8x8xf32>
    %43 = tpu.matmul %31, %42, %cst_16 {dimension_numbers = #tpu.dot_dimension_numbers<[1], [1], [0], [0], [0, 0, 1, 0], [], []>} : vector<8x8xf32>, vector<8x8xf32>, vector<8x8xf32> -> vector<8x8xf32>
    %44 = vector.extract_strided_slice %11 {offsets = [16, 0], sizes = [8, 8], strides = [1, 1]} : vector<32x8xf32> to vector<8x8xf32>
    %45 = vector.extract_strided_slice %12 {offsets = [16, 0], sizes = [8, 8], strides = [1, 1]} : vector<32x8xf32> to vector<8x8xf32>
    %46 = vector.extract_strided_slice %13 {offsets = [16, 0], sizes = [8, 8], strides = [1, 1]} : vector<32x8xf32> to vector<8x8xf32>
    %cst_17 = arith.constant dense<0.000000e+00> : vector<8x8xf32>
    %47 = tpu.matmul %44, %45, %cst_17 {dimension_numbers = #tpu.dot_dimension_numbers<[0], [0], [1], [1], [0, 1, 1, 1], [], []>} : vector<8x8xf32>, vector<8x8xf32>, vector<8x8xf32> -> vector<8x8xf32>
    %cst_18 = arith.constant dense<0xFF800000> : vector<8xf32>
    %48 = vector.multi_reduction <maximumf>, %47, %cst_18 [1] : vector<8x8xf32> to vector<8xf32>
    %49 = vector.shape_cast %48 : vector<8xf32> to vector<8x1xf32>
    %50 = vector.broadcast %49 : vector<8x1xf32> to vector<8x8xf32>
    %51 = arith.subf %47, %50 : vector<8x8xf32>
    %52 = math.exp %51 : vector<8x8xf32>
    %cst_19 = arith.constant dense<0.000000e+00> : vector<8xf32>
    %53 = vector.multi_reduction <add>, %52, %cst_19 [1] : vector<8x8xf32> to vector<8xf32>
    %54 = vector.shape_cast %53 : vector<8xf32> to vector<8x1xf32>
    %55 = tpu.reciprocal %54 : vector<8x1xf32> -> vector<8x1xf32>
    %56 = vector.broadcast %55 : vector<8x1xf32> to vector<8x8xf32>
    %57 = arith.mulf %52, %56 : vector<8x8xf32>
    %cst_20 = arith.constant dense<0.000000e+00> : vector<8x8xf32>
    %58 = tpu.matmul %46, %57, %cst_20 {dimension_numbers = #tpu.dot_dimension_numbers<[1], [1], [0], [0], [0, 0, 1, 0], [], []>} : vector<8x8xf32>, vector<8x8xf32>, vector<8x8xf32> -> vector<8x8xf32>
    %59 = vector.extract_strided_slice %11 {offsets = [24, 0], sizes = [8, 8], strides = [1, 1]} : vector<32x8xf32> to vector<8x8xf32>
    %60 = vector.extract_strided_slice %12 {offsets = [24, 0], sizes = [8, 8], strides = [1, 1]} : vector<32x8xf32> to vector<8x8xf32>
    %61 = vector.extract_strided_slice %13 {offsets = [24, 0], sizes = [8, 8], strides = [1, 1]} : vector<32x8xf32> to vector<8x8xf32>
    %cst_21 = arith.constant dense<0.000000e+00> : vector<8x8xf32>
    %62 = tpu.matmul %59, %60, %cst_21 {dimension_numbers = #tpu.dot_dimension_numbers<[0], [0], [1], [1], [0, 1, 1, 1], [], []>} : vector<8x8xf32>, vector<8x8xf32>, vector<8x8xf32> -> vector<8x8xf32>
    %cst_22 = arith.constant dense<0xFF800000> : vector<8xf32>
    %63 = vector.multi_reduction <maximumf>, %62, %cst_22 [1] : vector<8x8xf32> to vector<8xf32>
    %64 = vector.shape_cast %63 : vector<8xf32> to vector<8x1xf32>
    %65 = vector.broadcast %64 : vector<8x1xf32> to vector<8x8xf32>
    %66 = arith.subf %62, %65 : vector<8x8xf32>
    %67 = math.exp %66 : vector<8x8xf32>
    %cst_23 = arith.constant dense<0.000000e+00> : vector<8xf32>
    %68 = vector.multi_reduction <add>, %67, %cst_23 [1] : vector<8x8xf32> to vector<8xf32>
    %69 = vector.shape_cast %68 : vector<8xf32> to vector<8x1xf32>
    %70 = tpu.reciprocal %69 : vector<8x1xf32> -> vector<8x1xf32>
    %71 = vector.broadcast %70 : vector<8x1xf32> to vector<8x8xf32>
    %72 = arith.mulf %67, %71 : vector<8x8xf32>
    %cst_24 = arith.constant dense<0.000000e+00> : vector<8x8xf32>
    %73 = tpu.matmul %61, %72, %cst_24 {dimension_numbers = #tpu.dot_dimension_numbers<[1], [1], [0], [0], [0, 0, 1, 0], [], []>} : vector<8x8xf32>, vector<8x8xf32>, vector<8x8xf32> -> vector<8x8xf32>
    %74 = tpu.concatenate %28, %43, %58, %73 in 0 : vector<8x8xf32>, vector<8x8xf32>, vector<8x8xf32>, vector<8x8xf32> -> vector<32x8xf32>
    %c0_25 = arith.constant 0 : index
    %c0_26 = arith.constant 0 : index
    %75 = vector.load %arg4[%c0_25, %c0_26] : memref<16x32xf32, #tpu.memory_space<vmem>>, vector<16x32xf32>
    %cst_27 = arith.constant dense<0.000000e+00> : vector<8x16xf32>
    %76 = tpu.matmul %74, %75, %cst_27 {dimension_numbers = #tpu.dot_dimension_numbers<[0], [1], [1], [0], [0, 1, 1, 0], [], []>} : vector<32x8xf32>, vector<16x32xf32>, vector<8x16xf32> -> vector<8x16xf32>
    %c0_28 = arith.constant 0 : index
    %c0_29 = arith.constant 0 : index
    %77 = vector.load %arg5[%c0_28, %c0_29] : memref<1x16xf32, #tpu.memory_space<vmem>>, vector<1x16xf32>
    %78 = vector.broadcast %77 : vector<1x16xf32> to vector<8x16xf32>
    %79 = arith.addf %76, %78 : vector<8x16xf32>
    %c0_30 = arith.constant 0 : index
    %c0_31 = arith.constant 0 : index
    %c0_32 = arith.constant 0 : index
    %80 = vector.load %arg6[%c0_30, %c0_31, %c0_32] : memref<1x8x16xf32, #tpu.memory_space<vmem>>, vector<1x8x16xf32>
    %81 = vector.shape_cast %80 : vector<1x8x16xf32> to vector<8x16xf32>
    %82 = vector.shape_cast %79 : vector<8x16xf32> to vector<1x8x16xf32>
    tpu.vector_store %arg6[%c0_30, %c0_31, %c0_32], %82 {strides = array<i32>} : memref<1x8x16xf32, #tpu.memory_space<vmem>>, vector<1x8x16xf32>,
    return
  }
  func.func @transform_0(%arg0: i32, %arg1: i32) -> (i32, i32, i32) {
    %c0_i32 = arith.constant 0 : i32
    %c0_i32_0 = arith.constant 0 : i32
    %c0_i32_1 = arith.constant 0 : i32
    return %arg0, %c0_i32, %c0_i32_0 : i32, i32, i32
  }
  func.func @transform_1(%arg0: i32, %arg1: i32) -> (i32, i32) {
    %c0_i32 = arith.constant 0 : i32
    %c0_i32_0 = arith.constant 0 : i32
    %c0_i32_1 = arith.constant 0 : i32
    return %c0_i32, %c0_i32_0 : i32, i32
  }
  func.func @transform_2(%arg0: i32, %arg1: i32) -> (i32, i32) {
    %c0_i32 = arith.constant 0 : i32
    %c0_i32_0 = arith.constant 0 : i32
    %c0_i32_1 = arith.constant 0 : i32
    return %c0_i32, %c0_i32_0 : i32, i32
  }
  func.func @transform_3(%arg0: i32, %arg1: i32) -> (i32, i32) {
    %c0_i32 = arith.constant 0 : i32
    %c0_i32_0 = arith.constant 0 : i32
    %c0_i32_1 = arith.constant 0 : i32
    return %c0_i32, %c0_i32_0 : i32, i32
  }
  func.func @transform_4(%arg0: i32, %arg1: i32) -> (i32, i32, i32) {
    %c0_i32 = arith.constant 0 : i32
    %c0_i32_0 = arith.constant 0 : i32
    return %arg0, %arg1, %c0_i32 : i32, i32, i32
  }
}

</mosaic_0001>

<llo_original>
// kernel: tpu_custom_call.1
$region0: #{tpu_custom_call.1}
  #allocation0 [shape = 'u32[]', space=smem, size = 0x4, offset = 0x4, fixed_abs, tag = 'smem constant byte address 0x4 - core index']
  #allocation1 [shape = 'u32[144,128]{1,0:T(1,128)}', space=vmem, size = 0x12000, scoped, tag = 'internal scratch']
  #allocation2 [shape = 'f32[32,8]{1,0:T(8,128)}', space=vmem, size = 0x4000, scoped, tag = 'scratch operand']
  #allocation3 [shape = 'f32[32,8]{1,0:T(8,128)}', space=vmem, size = 0x4000, scoped, tag = 'scratch operand']
  %s0 = inlined_call_operand.hbm [shape: f32[2,8,32], index: 0, kind: input, shape index: {}]
  %s1 = inlined_call_operand.hbm [shape: f32[96,32], index: 1, kind: input, shape index: {}]
  %s2 = inlined_call_operand.hbm [shape: f32[16,32], index: 2, kind: input, shape index: {}]
  %s3 = inlined_call_operand.hbm [shape: f32[1,16], index: 3, kind: input, shape index: {}]
  %s4 = inlined_call_operand.hbm [shape: f32[2,8,16], index: 4, kind: output, shape index: {}]
  %s5 = sld [smem:[#allocation0]]
  $region69: #{tpu_custom_call.1} parent=0
    _
  %s7 = ssub.s32 1, %s5
  %s8 = scalar_select 0, %s7, %s5
  $region1: #{tpu_custom_call.1} parent=0
    #allocation4 [shape = 'u8[8192]{0}', space=vmem, size = 0x2000, scoped, tag = 'input window, operand 0']
    #allocation5 [shape = 's32[2]{0}', space=sflag, size = 0x8, scoped, tag = 'scoped memory for tpu_custom_call.1']
    #allocation6 [shape = 's32[2]{0}', space=sflag, size = 0x8, scoped, tag = 'scoped memory for tpu_custom_call.1']
    #allocation7 [shape = 'u8[49152]{0}', space=vmem, size = 0xc000, scoped, tag = 'input window, operand 1, single buffered']
    #allocation8 [shape = 's32[1]{0}', space=sflag, size = 0x4, scoped, tag = 'scoped memory for tpu_custom_call.1']
    #allocation9 [shape = 'u8[8192]{0}', space=vmem, size = 0x2000, scoped, tag = 'input window, operand 2, single buffered']
    #allocation10 [shape = 'u8[512]{0}', space=vmem, size = 0x400, scoped, tag = 'input window, operand 3, single buffered']
    #allocation11 [shape = 's32[1]{0}', space=sflag, size = 0x4, scoped, tag = 'scoped memory for tpu_custom_call.1']
    #allocation12 [shape = 'u8[8192]{0}', space=vmem, size = 0x2000, scoped, tag = 'output window, operand 0']
    %9 = vsyncpa [#allocation5], 0
    %s10 = scalar_lea.sflag [#allocation5], 1
    %11 = vsyncpa %s10, 0
    %12 = vsyncpa [#allocation8], 0
    %13 = vsyncpa [#allocation11], 0
    %14 = vsyncpa [#allocation6], 0
    %s15 = scalar_lea.sflag [#allocation6], 1
    %16 = vsyncpa %s15, 0
    loop: start=0, step=1, limit=4
    $region2: #{tpu_custom_call.1} parent=1 // loop_pre_header
      _
    $region3: #{tpu_custom_call.1} parent=1 // loop_header
      %s18 = sphi 0, %s22
      %p19 = scmp.ge.s32.totalorder %s18, 4
      %s25 = sphi 0, %s37
      %s26 = sphi 0, %s33
      %s27 = sphi 0, %s25
      %s28 = sphi 0, %s26
      %s29 = sphi 0, %s27
      %s30 = sphi 0, %s28
      %s40 = sphi 0, %s42
      %s43 = sphi 0, %s40
      %s44 = sphi 0, %s43
      %s60 = sphi 0, %s44
      %s64 = sphi 0, %s64
      %s66 = sphi 0, %s64
      %s67 = sphi 0, %s66
      %s81 = sphi 0, %s67
      %s85 = sphi 0, %s85
      %s87 = sphi 0, %s85
      %s88 = sphi 0, %s87
      %s102 = sphi 0, %s88
      %s106 = sphi 0, %s106
      %s108 = sphi 0, %s106
      %s109 = sphi 0, %s108
      %s123 = sphi 0, %s109
      %s131 = sphi 0, %s133
      %s134 = sphi 0, %s131
      %s135 = sphi 0, %s134
      %s151 = sphi 0, %s135
    $region4: #{tpu_custom_call.1} parent=1 // loop_header_branch
      %21 = sbr.rel (%p19) target = $region8
    $region5: #{tpu_custom_call.1} parent=1 // loop_body
      %s23 = ssub.s32 %s18, 1
      %s24 = ssub.s32 %s18, 2
      %s31 = sadd.s32 1, %s26
      %p32 = scmp.ge.s32.totalorder %s31, 1
      %s33 = scalar_select %p32, 0, %s31
      %s34 = sadd.s32 1, %s25
      %s35 = scalar_select %p32, %s34, %s25
      %p36 = scmp.ge.s32.totalorder %s35, 2
      %s37 = scalar_select %p36, 0, %s35
      %s38 = ssub.s32 %s25, %s37
      %p39 = scmp.eq.s32.totalorder %s38, 0
      %s41 = sadd.s32 %s40, 1
      %s42 = scalar_select %p39, %s40, %s41
      %p45 = pneg %p39
      %p46 = scmp.eq.s32.totalorder %s18, 1
      %p47 = por %p45, %p46
      %p48 = scmp.ne.s32.totalorder %s40, %s43
      %p49 = scmp.eq.s32.totalorder %s18, 0
      %p50 = por %p48, %p49
      %p51 = scmp.ne.s32.totalorder %s40, %s43
      %p52 = scmp.eq.s32.totalorder %s23, 1
      %p53 = por %p51, %p52
      %p54 = scmp.ne.s32.totalorder %s43, %s44
      %p55 = scmp.eq.s32.totalorder %s23, 0
      %p56 = por %p54, %p55
      %p57 = scmp.ne.s32.totalorder %s43, %s44
      %p58 = scmp.eq.s32.totalorder %s24, 1
      %p59 = por %p57, %p58
      %p61 = scmp.ne.s32.totalorder %s44, %s60
      %p62 = scmp.eq.s32.totalorder %s24, 0
      %p63 = por %p61, %p62
      %s65 = sadd.s32 %s64, 1
      %p68 = scmp.eq.s32.totalorder %s18, 1
      %p69 = scmp.ne.s32.totalorder %s64, %s66
      %p70 = scmp.eq.s32.totalorder %s18, 0
      %p71 = por %p69, %p70
      %p72 = scmp.ne.s32.totalorder %s64, %s66
      %p73 = scmp.eq.s32.totalorder %s23, 1
      %p74 = por %p72, %p73
      %p75 = scmp.ne.s32.totalorder %s66, %s67
      %p76 = scmp.eq.s32.totalorder %s23, 0
      %p77 = por %p75, %p76
      %p78 = scmp.ne.s32.totalorder %s66, %s67
      %p79 = scmp.eq.s32.totalorder %s24, 1
      %p80 = por %p78, %p79
      %p82 = scmp.ne.s32.totalorder %s67, %s81
      %p83 = scmp.eq.s32.totalorder %s24, 0
      %p84 = por %p82, %p83
      %s86 = sadd.s32 %s85, 1
      %p89 = scmp.eq.s32.totalorder %s18, 1
      %p90 = scmp.ne.s32.totalorder %s85, %s87
      %p91 = scmp.eq.s32.totalorder %s18, 0
      %p92 = por %p90, %p91
      %p93 = scmp.ne.s32.totalorder %s85, %s87
      %p94 = scmp.eq.s32.totalorder %s23, 1
      %p95 = por %p93, %p94
      %p96 = scmp.ne.s32.totalorder %s87, %s88
      %p97 = scmp.eq.s32.totalorder %s23, 0
      %p98 = por %p96, %p97
      %p99 = scmp.ne.s32.totalorder %s87, %s88
      %p100 = scmp.eq.s32.totalorder %s24, 1
      %p101 = por %p99, %p100
      %p103 = scmp.ne.s32.totalorder %s88, %s102
      %p104 = scmp.eq.s32.totalorder %s24, 0
      %p105 = por %p103, %p104
      %s107 = sadd.s32 %s106, 1
      %p110 = scmp.eq.s32.totalorder %s18, 1
      %p111 = scmp.ne.s32.totalorder %s106, %s108
      %p112 = scmp.eq.s32.totalorder %s18, 0
      %p113 = por %p111, %p112
      %p114 = scmp.ne.s32.totalorder %s106, %s108
      %p115 = scmp.eq.s32.totalorder %s23, 1
      %p116 = por %p114, %p115
      %p117 = scmp.ne.s32.totalorder %s108, %s109
      %p118 = scmp.eq.s32.totalorder %s23, 0
      %p119 = por %p117, %p118
      %p120 = scmp.ne.s32.totalorder %s108, %s109
      %p121 = scmp.eq.s32.totalorder %s24, 1
      %p122 = por %p120, %p121
      %p124 = scmp.ne.s32.totalorder %s109, %s123
      %p125 = scmp.eq.s32.totalorder %s24, 0
      %p126 = por %p124, %p125
      %s127 = ssub.s32 %s25, %s37
      %s128 = ssub.s32 %s26, %s33
      %s129 = sor.u32 %s127, %s128
      %p130 = scmp.eq.s32.totalorder %s129, 0
      %s132 = sadd.s32 %s131, 1
      %s133 = scalar_select %p130, %s131, %s132
      %p136 = pneg %p130
      %p137 = scmp.eq.s32.totalorder %s18, 1
      %p138 = por %p136, %p137
      %p139 = scmp.ne.s32.totalorder %s131, %s134
      %p140 = scmp.eq.s32.totalorder %s18, 0
      %p141 = por %p139, %p140
      %p142 = scmp.ne.s32.totalorder %s131, %s134
      %p143 = scmp.eq.s32.totalorder %s23, 1
      %p144 = por %p142, %p143
      %p145 = scmp.ne.s32.totalorder %s134, %s135
      %p146 = scmp.eq.s32.totalorder %s23, 0
      %p147 = por %p145, %p146
      %p148 = scmp.ne.s32.totalorder %s134, %s135
      %p149 = scmp.eq.s32.totalorder %s24, 1
      %p150 = por %p148, %p149
      %p152 = scmp.ne.s32.totalorder %s135, %s151
      %p153 = scmp.eq.s32.totalorder %s24, 0
      %p154 = por %p152, %p153
      %p155 = scmp.le.s32.totalorder 1, %s18
      %p156 = scmp.lt.s32.totalorder %s18, 3
      %p157 = pnand %p155, %p156
      %p158 = pneg %p157
      // Predicated region
      $region9: #{tpu_custom_call.1} parent=5 // pred_check
        _
      $region10: #{tpu_custom_call.1} parent=5 // pred_check_branch
        %160 = sbr.rel (%p157) target = $region12
      $region11: #{tpu_custom_call.1} parent=5 // pred_region
        %s161 = ssub.s32 %s18, 1
        // Predicated region
        $region13: #{tpu_custom_call.1} parent=11 // pred_check
          %p162 = pneg %p77
        $region14: #{tpu_custom_call.1} parent=11 // pred_check_branch
          %164 = sbr.rel (%p162) target = $region16
        $region15: #{tpu_custom_call.1} parent=11 // pred_region
          %s166 = ssub.s32 1536, 1536
          %167 = vsyncadd [#allocation8], %s166
          %s168 = sshll.u32 [#allocation7], 4
          %s169 = int_to_ptr.vmem [resolvable:$true] %s168
          %174 = dma.hbm_to_vmem [thread:$0]  %s1, 1536, %s169, [#allocation8], 128, 128, 8
        $region16: #{tpu_custom_call.1} parent=11 // pred_fallthru
          _
        // Predicated region
        $region17: #{tpu_custom_call.1} parent=11 // pred_check
          %p175 = pneg %p98
        $region18: #{tpu_custom_call.1} parent=11 // pred_check_branch
          %177 = sbr.rel (%p175) target = $region20
        $region19: #{tpu_custom_call.1} parent=11 // pred_region
          %s179 = ssub.s32 256, 256
          %180 = vsyncadd [#allocation8], %s179
          %s181 = sshll.u32 [#allocation9], 4
          %s182 = int_to_ptr.vmem [resolvable:$true] %s181
          %187 = dma.hbm_to_vmem [thread:$0]  %s2, 256, %s182, [#allocation8], 128, 128, 8
        $region20: #{tpu_custom_call.1} parent=11 // pred_fallthru
          _
        // Predicated region
        $region21: #{tpu_custom_call.1} parent=11 // pred_check
          %p188 = pneg %p119
        $region22: #{tpu_custom_call.1} parent=11 // pred_check_branch
          %190 = sbr.rel (%p188) target = $region24
        $region23: #{tpu_custom_call.1} parent=11 // pred_region
          %s192 = ssub.s32 16, 16
          %193 = vsyncadd [#allocation11], %s192
          %s195 = sshll.u32 [#allocation10], 4
          %s196 = int_to_ptr.vmem [resolvable:$true] %s195
          %198 = dma.hbm_to_vmem [thread:$0]  %s3, 16, %s196, [#allocation11]
        $region24: #{tpu_custom_call.1} parent=11 // pred_fallthru
          _
      $region12: #{tpu_custom_call.1} parent=5 // pred_fallthru
        _
      %p199 = scmp.lt.s32.totalorder %s18, 2
      // Predicated region
      $region25: #{tpu_custom_call.1} parent=5 // pred_check
        %p200 = pneg %p199
      $region26: #{tpu_custom_call.1} parent=5 // pred_check_branch
        %202 = sbr.rel (%p200) target = $region28
      $region27: #{tpu_custom_call.1} parent=5 // pred_region
        // Predicated region
        $region29: #{tpu_custom_call.1} parent=27 // pred_check
          %p203 = pneg %p50
        $region30: #{tpu_custom_call.1} parent=27 // pred_check_branch
          %205 = sbr.rel (%p203) target = $region32
        $region31: #{tpu_custom_call.1} parent=27 // pred_region
          %s206 = sand.u32 %s40, 1
          %s207 = scalar_lea.sflag [#allocation5], %s206
          %s208 = sand.u32 %s40, 1
          %s209 = smul.addr %s208, 8
          %s210 = scalar_lea.vmem [#allocation4], %s209
          %s212 = ssub.s32 128, 128
          %213 = vsyncadd %s207, %s212
          %s214 = smul.addr %s25, 128
          %s215 = scalar_lea.hbm %s0, %s214
          %s217 = sshll.u32 %s210, 4
          %s218 = int_to_ptr.vmem [resolvable:$true] %s217
          %220 = dma.hbm_to_vmem [thread:$0]  %s215, 128, %s218, %s207
        $region32: #{tpu_custom_call.1} parent=27 // pred_fallthru
          _
      $region28: #{tpu_custom_call.1} parent=5 // pred_fallthru
        _
      %p221 = scmp.le.s32.totalorder 1, %s18
      %p222 = scmp.lt.s32.totalorder %s18, 3
      %p223 = pnand %p221, %p222
      %p224 = pneg %p223
      // Predicated region
      $region33: #{tpu_custom_call.1} parent=5 // pred_check
        _
      $region34: #{tpu_custom_call.1} parent=5 // pred_check_branch
        %226 = sbr.rel (%p223) target = $region36
      $region35: #{tpu_custom_call.1} parent=5 // pred_region
        %s227 = ssub.s32 %s18, 1
        %s228 = sand.u32 %s43, 1
        %s229 = scalar_lea.sflag [#allocation5], %s228
        %s230 = sand.u32 %s43, 1
        %s231 = smul.addr %s230, 8
        %s232 = scalar_lea.vmem [#allocation4], %s231
        // Predicated region
        $region37: #{tpu_custom_call.1} parent=35 // pred_check
          %p233 = pneg %p56
        $region38: #{tpu_custom_call.1} parent=35 // pred_check_branch
          %235 = sbr.rel (%p233) target = $region40
        $region39: #{tpu_custom_call.1} parent=35 // pred_region
          %236 = dma.done %s229, 128
        $region40: #{tpu_custom_call.1} parent=35 // pred_fallthru
          _
        // Predicated region
        $region41: #{tpu_custom_call.1} parent=35 // pred_check
          %p237 = pneg %p77
        $region42: #{tpu_custom_call.1} parent=35 // pred_check_branch
          %239 = sbr.rel (%p237) target = $region44
        $region43: #{tpu_custom_call.1} parent=35 // pred_region
          %240 = dma.done [#allocation8], 1536
        $region44: #{tpu_custom_call.1} parent=35 // pred_fallthru
          _
        // Predicated region
        $region45: #{tpu_custom_call.1} parent=35 // pred_check
          %p241 = pneg %p98
        $region46: #{tpu_custom_call.1} parent=35 // pred_check_branch
          %243 = sbr.rel (%p241) target = $region48
        $region47: #{tpu_custom_call.1} parent=35 // pred_region
          %244 = dma.done [#allocation8], 256
        $region48: #{tpu_custom_call.1} parent=35 // pred_fallthru
          _
        // Predicated region
        $region49: #{tpu_custom_call.1} parent=35 // pred_check
          %p245 = pneg %p119
        $region50: #{tpu_custom_call.1} parent=35 // pred_check_branch
          %247 = sbr.rel (%p245) target = $region52
        $region51: #{tpu_custom_call.1} parent=35 // pred_region
          %248 = dma.done [#allocation11], 16
        $region52: #{tpu_custom_call.1} parent=35 // pred_fallthru
          _
        %s249 = sand.u32 %s43, 1
        %s250 = scalar_lea.sflag [#allocation5], %s249
        %s251 = sand.u32 %s43, 1
        %s252 = smul.addr %s251, 8
        %s253 = scalar_lea.vmem [#allocation4], %s252
        %p254 = pneg %p56
        %p255 = pneg %p53
        %p256 = pneg %p77
        %p257 = pneg %p74
        %p258 = pneg %p98
        %p259 = pneg %p95
        %p260 = pneg %p119
        %p261 = pneg %p116
        %p262 = pneg %p147
        %p263 = pneg %p144
        %s264 = sand.u32 %s134, 1
        %s265 = scalar_lea.sflag [#allocation6], %s264
        %s266 = sand.u32 %s134, 1
        %s267 = smul.addr %s266, 8
        %s268 = scalar_lea.vmem [#allocation12], %s267
        %p269 = scmp.eq.s32.totalorder %s28, 0
        // Predicated region
        $region53: #{tpu_custom_call.1} parent=35 // pred_check
          %p270 = pneg %p269
        $region54: #{tpu_custom_call.1} parent=35 // pred_check_branch
          %272 = sbr.rel (%p270) target = $region56
        $region55: #{tpu_custom_call.1} parent=35 // pred_region
          %v273 = vld [vmem:[%s232] sm:$0xff]
          %v274 = vld [vmem:[#allocation7 + $0x20] sm:$0xff]
          %v275 = vld [vmem:[#allocation7 + $0x28] sm:$0xff]
          %v276 = vld [vmem:[#allocation7 + $0x30] sm:$0xff]
          %v277 = vld [vmem:[#allocation7 + $0x38] sm:$0xff]
          %v278 = vld [vmem:[#allocation7 + $0x40] sm:$0xff]
          %v279 = vld [vmem:[#allocation7 + $0x48] sm:$0xff]
          %v280 = vld [vmem:[#allocation7 + $0x50] sm:$0xff]
          %v281 = vld [vmem:[#allocation7 + $0x58] sm:$0xff]
          %vm282 = vcmask 261120
          %v284 = vsel %vm282, %v274, 0
          %v287 = vsel %vm282, %v275, 0
          %v290 = vsel %vm282, %v276, 0
          %v293 = vsel %vm282, %v277, 0
          %v296 = vsel %vm282, %v273, 0
          %298 = vmatprep.subr.mxu0 0.0
          %299 = vmatpush1.xpose.msra.mxu0 %v296
          %300 = vmatprep.subr.mxu0 0.0
          %301 = vmatpush1.xpose.msra.mxu0 0.0
          %302 = vmatprep.subr.mxu0 0.0
          %303 = vmatpush1.xpose.msra.mxu0 0.0
          %304 = vmatprep.subr.mxu0 0.0
          %305 = vmatpush1.xpose.msra.mxu0 0.0
          %306 = vmatprep.subr.mxu0 0.0
          %307 = vmatpush1.xpose.msra.mxu0 0.0
          %308 = vmatprep.subr.mxu0 0.0
          %309 = vmatpush1.xpose.msra.mxu0 0.0
          %310 = vmatprep.subr.mxu0 0.0
          %311 = vmatpush1.xpose.msra.mxu0 0.0
          %312 = vmatprep.subr.mxu0 0.0
          %313 = vmatpush1.xpose.msra.mxu0 0.0
          %314 = vmatprep.subr.mxu0 0.0
          %315 = vmatpush1.xpose.msra.mxu0 0.0
          %316 = vmatprep.subr.mxu0 0.0
          %317 = vmatpush1.xpose.msra.mxu0 0.0
          %318 = vmatprep.subr.mxu0 0.0
          %319 = vmatpush1.xpose.msra.mxu0 0.0
          %320 = vmatprep.subr.mxu0 0.0
          %321 = vmatpush1.xpose.msra.mxu0 0.0
          %322 = vmatprep.subr.mxu0 0.0
          %323 = vmatpush1.xpose.msra.mxu0 0.0
          %324 = vmatprep.subr.mxu0 0.0
          %325 = vmatpush1.xpose.msra.mxu0 0.0
          %326 = vmatprep.subr.mxu0 0.0
          %327 = vmatpush1.xpose.msra.mxu0 0.0
          %328 = vmatprep.subr.mxu0 0.0
          %329 = vmatpush1.xpose.msra.mxu0 0.0
          %330 = vmatprep.subr.mxu0 0.0
          %331 = vmatpush1.xpose.msra.mxu0 0.0
          %332 = vmatprep.subr.mxu0 0.0
          %333 = vmatpush1.xpose.msra.mxu0 0.0
          %334 = vmatprep.subr.mxu0 0.0
          %335 = vmatpush1.xpose.msra.mxu0 0.0
          %336 = vmatprep.subr.mxu0 0.0
          %337 = vmatpush1.xpose.msra.mxu0 0.0
          %338 = vmatprep.subr.mxu0 0.0
          %339 = vmatpush1.xpose.msra.mxu0 0.0
          %340 = vmatprep.subr.mxu0 0.0
          %341 = vmatpush1.xpose.msra.mxu0 0.0
          %342 = vmatprep.subr.mxu0 0.0
          %343 = vmatpush1.xpose.msra.mxu0 0.0
          %344 = vmatprep.subr.mxu0 0.0
          %345 = vmatpush1.xpose.msra.mxu0 0.0
          %346 = vmatprep.subr.mxu0 0.0
          %347 = vmatpush1.xpose.msra.mxu0 0.0
          %348 = vmatprep.subr.mxu0 0.0
          %349 = vmatpush1.xpose.msra.mxu0 0.0
          %350 = vmatprep.subr.mxu0 0.0
          %351 = vmatpush1.xpose.msra.mxu0 0.0
          %352 = vmatprep.subr.mxu0 0.0
          %353 = vmatpush1.xpose.msra.mxu0 0.0
          %354 = vmatprep.subr.mxu0 0.0
          %355 = vmatpush1.xpose.msra.mxu0 0.0
          %356 = vmatprep.subr.mxu0 0.0
          %357 = vmatpush1.xpose.msra.mxu0 0.0
          %358 = vmatprep.subr.mxu0 0.0
          %359 = vmatpush1.xpose.msra.mxu0 0.0
          %360 = vmatprep.subr.mxu0 0.0
          %361 = vmatpush1.xpose.msra.mxu0 0.0
          %362 = vmatprep.mubr.f32.mxu0 0.0
          %363 = vmatmul.mubr.f32.gmra.mrb[0].mxu0 %v284
          %v364 = vpop.f32.mrb[0].mxu0
          %v365 = vadd.f32 0.0, %v364
          %v366 = vpop.f32.mrb[0].mxu0
          %367 = vmatprep.mubr.f32.mxu0 0.0
          %368 = vmatmul.mubr.f32.gmra.mrb[0].mxu0 %v287
          %v369 = vpop.f32.mrb[0].mxu0
          %v370 = vadd.f32 0.0, %v369
          %v371 = vpop.f32.mrb[0].mxu0
          %372 = vmatprep.mubr.f32.mxu0 0.0
          %373 = vmatmul.mubr.f32.gmra.mrb[0].mxu0 %v290
          %v374 = vpop.f32.mrb[0].mxu0
          %v375 = vadd.f32 0.0, %v374
          %v376 = vpop.f32.mrb[0].mxu0
          %377 = vmatprep.mubr.f32.mxu0 0.0
          %378 = vmatmul.mubr.f32.gmra.mrb[0].mxu0 %v293
          %v379 = vpop.f32.mrb[0].mxu0
          %v380 = vadd.f32 0.0, %v379
          %v381 = vpop.f32.mrb[0].mxu0
          %382 = vdwg.mxu0
          %vm383 = vcmask 64512
          %384 = vst.msk [vmem:[#allocation2] sm:$0xff] %vm383, %v365
          %385 = vst.msk [vmem:[#allocation2 + $0x8] sm:$0xff] %vm383, %v370
          %386 = vst.msk [vmem:[#allocation2 + $0x10] sm:$0xff] %vm383, %v375
          %387 = vst.msk [vmem:[#allocation2 + $0x18] sm:$0xff] %vm383, %v380
          %v389 = vsel %vm282, %v278, 0
          %v392 = vsel %vm282, %v279, 0
          %v395 = vsel %vm282, %v280, 0
          %v398 = vsel %vm282, %v281, 0
          %400 = vmatprep.subr.mxu0 0.0
          %401 = vmatpush1.xpose.msra.mxu0 %v296
          %402 = vmatprep.subr.mxu0 0.0
          %403 = vmatpush1.xpose.msra.mxu0 0.0
          %404 = vmatprep.subr.mxu0 0.0
          %405 = vmatpush1.xpose.msra.mxu0 0.0
          %406 = vmatprep.subr.mxu0 0.0
          %407 = vmatpush1.xpose.msra.mxu0 0.0
          %408 = vmatprep.subr.mxu0 0.0
          %409 = vmatpush1.xpose.msra.mxu0 0.0
          %410 = vmatprep.subr.mxu0 0.0
          %411 = vmatpush1.xpose.msra.mxu0 0.0
          %412 = vmatprep.subr.mxu0 0.0
          %413 = vmatpush1.xpose.msra.mxu0 0.0
          %414 = vmatprep.subr.mxu0 0.0
          %415 = vmatpush1.xpose.msra.mxu0 0.0
          %416 = vmatprep.subr.mxu0 0.0
          %417 = vmatpush1.xpose.msra.mxu0 0.0
          %418 = vmatprep.subr.mxu0 0.0
          %419 = vmatpush1.xpose.msra.mxu0 0.0
          %420 = vmatprep.subr.mxu0 0.0
          %421 = vmatpush1.xpose.msra.mxu0 0.0
          %422 = vmatprep.subr.mxu0 0.0
          %423 = vmatpush1.xpose.msra.mxu0 0.0
          %424 = vmatprep.subr.mxu0 0.0
          %425 = vmatpush1.xpose.msra.mxu0 0.0
          %426 = vmatprep.subr.mxu0 0.0
          %427 = vmatpush1.xpose.msra.mxu0 0.0
          %428 = vmatprep.subr.mxu0 0.0
          %429 = vmatpush1.xpose.msra.mxu0 0.0
          %430 = vmatprep.subr.mxu0 0.0
          %431 = vmatpush1.xpose.msra.mxu0 0.0
          %432 = vmatprep.subr.mxu0 0.0
          %433 = vmatpush1.xpose.msra.mxu0 0.0
          %434 = vmatprep.subr.mxu0 0.0
          %435 = vmatpush1.xpose.msra.mxu0 0.0
          %436 = vmatprep.subr.mxu0 0.0
          %437 = vmatpush1.xpose.msra.mxu0 0.0
          %438 = vmatprep.subr.mxu0 0.0
          %439 = vmatpush1.xpose.msra.mxu0 0.0
          %440 = vmatprep.subr.mxu0 0.0
          %441 = vmatpush1.xpose.msra.mxu0 0.0
          %442 = vmatprep.subr.mxu0 0.0
          %443 = vmatpush1.xpose.msra.mxu0 0.0
          %444 = vmatprep.subr.mxu0 0.0
          %445 = vmatpush1.xpose.msra.mxu0 0.0
          %446 = vmatprep.subr.mxu0 0.0
          %447 = vmatpush1.xpose.msra.mxu0 0.0
          %448 = vmatprep.subr.mxu0 0.0
          %449 = vmatpush1.xpose.msra.mxu0 0.0
          %450 = vmatprep.subr.mxu0 0.0
          %451 = vmatpush1.xpose.msra.mxu0 0.0
          %452 = vmatprep.subr.mxu0 0.0
          %453 = vmatpush1.xpose.msra.mxu0 0.0
          %454 = vmatprep.subr.mxu0 0.0
          %455 = vmatpush1.xpose.msra.mxu0 0.0
          %456 = vmatprep.subr.mxu0 0.0
          %457 = vmatpush1.xpose.msra.mxu0 0.0
          %458 = vmatprep.subr.mxu0 0.0
          %459 = vmatpush1.xpose.msra.mxu0 0.0
          %460 = vmatprep.subr.mxu0 0.0
          %461 = vmatpush1.xpose.msra.mxu0 0.0
          %462 = vmatprep.subr.mxu0 0.0
          %463 = vmatpush1.xpose.msra.mxu0 0.0
          %464 = vmatprep.mubr.f32.mxu0 0.0
          %465 = vmatmul.mubr.f32.gmra.mrb[0].mxu0 %v389
          %v466 = vpop.f32.mrb[0].mxu0
          %v467 = vadd.f32 0.0, %v466
          %v468 = vpop.f32.mrb[0].mxu0
          %469 = vmatprep.mubr.f32.mxu0 0.0
          %470 = vmatmul.mubr.f32.gmra.mrb[0].mxu0 %v392
          %v471 = vpop.f32.mrb[0].mxu0
          %v472 = vadd.f32 0.0, %v471
          %v473 = vpop.f32.mrb[0].mxu0
          %474 = vmatprep.mubr.f32.mxu0 0.0
          %475 = vmatmul.mubr.f32.gmra.mrb[0].mxu0 %v395
          %v476 = vpop.f32.mrb[0].mxu0
          %v477 = vadd.f32 0.0, %v476
          %v478 = vpop.f32.mrb[0].mxu0
          %479 = vmatprep.mubr.f32.mxu0 0.0
          %480 = vmatmul.mubr.f32.gmra.mrb[0].mxu0 %v398
          %v481 = vpop.f32.mrb[0].mxu0
          %v482 = vadd.f32 0.0, %v481
          %v483 = vpop.f32.mrb[0].mxu0
          %484 = vdwg.mxu0
          %485 = vst.msk [vmem:[#allocation3] sm:$0xff] %vm383, %v467
          %486 = vst.msk [vmem:[#allocation3 + $0x8] sm:$0xff] %vm383, %v472
          %487 = vst.msk [vmem:[#allocation3 + $0x10] sm:$0xff] %vm383, %v477
          %488 = vst.msk [vmem:[#allocation3 + $0x18] sm:$0xff] %vm383, %v482
        $region56: #{tpu_custom_call.1} parent=35 // pred_fallthru
          _
        %s489 = smul.u32 %s28, 8
        %s490 = scalar_lea.vmem %s232, %s489 [#allocation4]
        %v491 = vld [vmem:[%s490] sm:$0xff]
        %v492 = vld [vmem:[#allocation7] sm:$0xff]
        %v493 = vld [vmem:[#allocation7 + $0x8] sm:$0xff]
        %v494 = vld [vmem:[#allocation7 + $0x10] sm:$0xff]
        %v495 = vld [vmem:[#allocation7 + $0x18] sm:$0xff]
        %vm496 = vcmask 261120
        %v498 = vsel %vm496, %v492, 0
        %v501 = vsel %vm496, %v493, 0
        %v504 = vsel %vm496, %v494, 0
        %v507 = vsel %vm496, %v495, 0
        %v510 = vsel %vm496, %v491, 0
        %512 = vmatprep.subr.mxu0 0.0
        %513 = vmatpush1.xpose.msra.mxu0 %v510
        %514 = vmatprep.subr.mxu0 0.0
        %515 = vmatpush1.xpose.msra.mxu0 0.0
        %516 = vmatprep.subr.mxu0 0.0
        %517 = vmatpush1.xpose.msra.mxu0 0.0
        %518 = vmatprep.subr.mxu0 0.0
        %519 = vmatpush1.xpose.msra.mxu0 0.0
        %520 = vmatprep.subr.mxu0 0.0
        %521 = vmatpush1.xpose.msra.mxu0 0.0
        %522 = vmatprep.subr.mxu0 0.0
        %523 = vmatpush1.xpose.msra.mxu0 0.0
        %524 = vmatprep.subr.mxu0 0.0
        %525 = vmatpush1.xpose.msra.mxu0 0.0
        %526 = vmatprep.subr.mxu0 0.0
        %527 = vmatpush1.xpose.msra.mxu0 0.0
        %528 = vmatprep.subr.mxu0 0.0
        %529 = vmatpush1.xpose.msra.mxu0 0.0
        %530 = vmatprep.subr.mxu0 0.0
        %531 = vmatpush1.xpose.msra.mxu0 0.0
        %532 = vmatprep.subr.mxu0 0.0
        %533 = vmatpush1.xpose.msra.mxu0 0.0
        %534 = vmatprep.subr.mxu0 0.0
        %535 = vmatpush1.xpose.msra.mxu0 0.0
        %536 = vmatprep.subr.mxu0 0.0
        %537 = vmatpush1.xpose.msra.mxu0 0.0
        %538 = vmatprep.subr.mxu0 0.0
        %539 = vmatpush1.xpose.msra.mxu0 0.0
        %540 = vmatprep.subr.mxu0 0.0
        %541 = vmatpush1.xpose.msra.mxu0 0.0
        %542 = vmatprep.subr.mxu0 0.0
        %543 = vmatpush1.xpose.msra.mxu0 0.0
        %544 = vmatprep.subr.mxu0 0.0
        %545 = vmatpush1.xpose.msra.mxu0 0.0
        %546 = vmatprep.subr.mxu0 0.0
        %547 = vmatpush1.xpose.msra.mxu0 0.0
        %548 = vmatprep.subr.mxu0 0.0
        %549 = vmatpush1.xpose.msra.mxu0 0.0
        %550 = vmatprep.subr.mxu0 0.0
        %551 = vmatpush1.xpose.msra.mxu0 0.0
        %552 = vmatprep.subr.mxu0 0.0
        %553 = vmatpush1.xpose.msra.mxu0 0.0
        %554 = vmatprep.subr.mxu0 0.0
        %555 = vmatpush1.xpose.msra.mxu0 0.0
        %556 = vmatprep.subr.mxu0 0.0
        %557 = vmatpush1.xpose.msra.mxu0 0.0
        %558 = vmatprep.subr.mxu0 0.0
        %559 = vmatpush1.xpose.msra.mxu0 0.0
        %560 = vmatprep.subr.mxu0 0.0
        %561 = vmatpush1.xpose.msra.mxu0 0.0
        %562 = vmatprep.subr.mxu0 0.0
        %563 = vmatpush1.xpose.msra.mxu0 0.0
        %564 = vmatprep.subr.mxu0 0.0
        %565 = vmatpush1.xpose.msra.mxu0 0.0
        %566 = vmatprep.subr.mxu0 0.0
        %567 = vmatpush1.xpose.msra.mxu0 0.0
        %568 = vmatprep.subr.mxu0 0.0
        %569 = vmatpush1.xpose.msra.mxu0 0.0
        %570 = vmatprep.subr.mxu0 0.0
        %571 = vmatpush1.xpose.msra.mxu0 0.0
        %572 = vmatprep.subr.mxu0 0.0
        %573 = vmatpush1.xpose.msra.mxu0 0.0
        %574 = vmatprep.subr.mxu0 0.0
        %575 = vmatpush1.xpose.msra.mxu0 0.0
        %576 = vmatprep.mubr.f32.mxu0 0.0
        %577 = vmatmul.mubr.f32.gmra.mrb[0].mxu0 %v498
        %v578 = vpop.f32.mrb[0].mxu0
        %v579 = vadd.f32 0.0, %v578
        %v580 = vpop.f32.mrb[0].mxu0
        %581 = vmatprep.mubr.f32.mxu0 0.0
        %582 = vmatmul.mubr.f32.gmra.mrb[0].mxu0 %v501
        %v583 = vpop.f32.mrb[0].mxu0
        %v584 = vadd.f32 0.0, %v583
        %v585 = vpop.f32.mrb[0].mxu0
        %586 = vmatprep.mubr.f32.mxu0 0.0
        %587 = vmatmul.mubr.f32.gmra.mrb[0].mxu0 %v504
        %v588 = vpop.f32.mrb[0].mxu0
        %v589 = vadd.f32 0.0, %v588
        %v590 = vpop.f32.mrb[0].mxu0
        %591 = vmatprep.mubr.f32.mxu0 0.0
        %592 = vmatmul.mubr.f32.gmra.mrb[0].mxu0 %v507
        %v593 = vpop.f32.mrb[0].mxu0
        %v594 = vadd.f32 0.0, %v593
        %v595 = vpop.f32.mrb[0].mxu0
        %596 = vdwg.mxu0
        %v597 = vmul.f32 %v579, 0.35355338
        %v598 = vmul.f32 %v584, 0.35355338
        %v599 = vmul.f32 %v589, 0.35355338
        %v600 = vmul.f32 %v594, 0.35355338
        %v601 = vld [vmem:[#allocation2] sm:$0xff]
        %v602 = vld [vmem:[#allocation2 + $0x8] sm:$0xff]
        %v603 = vld [vmem:[#allocation2 + $0x10] sm:$0xff]
        %v604 = vld [vmem:[#allocation2 + $0x18] sm:$0xff]
        %v605 = vld [vmem:[#allocation3] sm:$0xff]
        %v606 = vld [vmem:[#allocation3 + $0x8] sm:$0xff]
        %v607 = vld [vmem:[#allocation3 + $0x10] sm:$0xff]
        %v608 = vld [vmem:[#allocation3 + $0x18] sm:$0xff]
        %609 = vxpose.xlu0.b32.start [1/16] %v597, 128
        %610 = vxpose.xlu0.b32.cont [2/16] 0.0, 128
        %611 = vxpose.xlu0.b32.cont [3/16] 0.0, 128
        %612 = vxpose.xlu0.b32.cont [4/16] 0.0, 128
        %613 = vxpose.xlu0.b32.cont [5/16] 0.0, 128
        %614 = vxpose.xlu0.b32.cont [6/16] 0.0, 128
        %615 = vxpose.xlu0.b32.cont [7/16] 0.0, 128
        %616 = vxpose.xlu0.b32.cont [8/16] 0.0, 128
        %617 = vxpose.xlu0.b32.cont [9/16] 0.0, 128
        %618 = vxpose.xlu0.b32.cont [10/16] 0.0, 128
        %619 = vxpose.xlu0.b32.cont [11/16] 0.0, 128
        %620 = vxpose.xlu0.b32.cont [12/16] 0.0, 128
        %621 = vxpose.xlu0.b32.cont [13/16] 0.0, 128
        %622 = vxpose.xlu0.b32.cont [14/16] 0.0, 128
        %623 = vxpose.xlu0.b32.cont [15/16] 0.0, 128
        %624 = vxpose.xlu0.b32.end [16/16] 0.0, 128
        %v625 = vpop.trf.xlu0
        %v626 = vpop.trf.xlu0
        %v627 = vpop.trf.xlu0
        %v628 = vpop.trf.xlu0
        %v629 = vpop.trf.xlu0
        %v630 = vpop.trf.xlu0
        %v631 = vpop.trf.xlu0
        %v632 = vpop.trf.xlu0
        %v633 = vpop.trf.xlu0
        %v634 = vpop.trf.xlu0
        %v635 = vpop.trf.xlu0
        %v636 = vpop.trf.xlu0
        %v637 = vpop.trf.xlu0
        %v638 = vpop.trf.xlu0
        %v639 = vpop.trf.xlu0
        %v640 = vpop.trf.xlu0
        %vm641 = vcmask 64512
        %v643 = vsel %vm641, %v625, 0
        %645 = vmatprep.subr.mxu0 0.0
        %646 = vmatpush1.msra.mxu0 %v601
        %647 = vmatprep.subr.mxu0 0.0
        %648 = vmatpush1.msra.mxu0 0.0
        %649 = vmatprep.subr.mxu0 0.0
        %650 = vmatpush1.msra.mxu0 0.0
        %651 = vmatprep.subr.mxu0 0.0
        %652 = vmatpush1.msra.mxu0 0.0
        %653 = vmatprep.subr.mxu0 0.0
        %654 = vmatpush1.msra.mxu0 0.0
        %655 = vmatprep.subr.mxu0 0.0
        %656 = vmatpush1.msra.mxu0 0.0
        %657 = vmatprep.subr.mxu0 0.0
        %658 = vmatpush1.msra.mxu0 0.0
        %659 = vmatprep.subr.mxu0 0.0
        %660 = vmatpush1.msra.mxu0 0.0
        %661 = vmatprep.subr.mxu0 0.0
        %662 = vmatpush1.msra.mxu0 0.0
        %663 = vmatprep.subr.mxu0 0.0
        %664 = vmatpush1.msra.mxu0 0.0
        %665 = vmatprep.subr.mxu0 0.0
        %666 = vmatpush1.msra.mxu0 0.0
        %667 = vmatprep.subr.mxu0 0.0
        %668 = vmatpush1.msra.mxu0 0.0
        %669 = vmatprep.subr.mxu0 0.0
        %670 = vmatpush1.msra.mxu0 0.0
        %671 = vmatprep.subr.mxu0 0.0
        %672 = vmatpush1.msra.mxu0 0.0
        %673 = vmatprep.subr.mxu0 0.0
        %674 = vmatpush1.msra.mxu0 0.0
        %675 = vmatprep.subr.mxu0 0.0
        %676 = vmatpush1.msra.mxu0 0.0
        %677 = vmatprep.subr.mxu0 0.0
        %678 = vmatpush1.msra.mxu0 0.0
        %679 = vmatprep.subr.mxu0 0.0
        %680 = vmatpush1.msra.mxu0 0.0
        %681 = vmatprep.subr.mxu0 0.0
        %682 = vmatpush1.msra.mxu0 0.0
        %683 = vmatprep.subr.mxu0 0.0
        %684 = vmatpush1.msra.mxu0 0.0
        %685 = vmatprep.subr.mxu0 0.0
        %686 = vmatpush1.msra.mxu0 0.0
        %687 = vmatprep.subr.mxu0 0.0
        %688 = vmatpush1.msra.mxu0 0.0
        %689 = vmatprep.subr.mxu0 0.0
        %690 = vmatpush1.msra.mxu0 0.0
        %691 = vmatprep.subr.mxu0 0.0
        %692 = vmatpush1.msra.mxu0 0.0
        %693 = vmatprep.subr.mxu0 0.0
        %694 = vmatpush1.msra.mxu0 0.0
        %695 = vmatprep.subr.mxu0 0.0
        %696 = vmatpush1.msra.mxu0 0.0
        %697 = vmatprep.subr.mxu0 0.0
        %698 = vmatpush1.msra.mxu0 0.0
        %699 = vmatprep.subr.mxu0 0.0
        %700 = vmatpush1.msra.mxu0 0.0
        %701 = vmatprep.subr.mxu0 0.0
        %702 = vmatpush1.msra.mxu0 0.0
        %703 = vmatprep.subr.mxu0 0.0
        %704 = vmatpush1.msra.mxu0 0.0
        %705 = vmatprep.subr.mxu0 0.0
        %706 = vmatpush1.msra.mxu0 0.0
        %707 = vmatprep.subr.mxu0 0.0
        %708 = vmatpush1.msra.mxu0 0.0
        %709 = vmatprep.mubr.f32.mxu0 0.0
        %710 = vmatmul.mubr.f32.gmra.mrb[0].mxu0 %v643
        %v711 = vpop.f32.mrb[0].mxu0
        %v712 = vadd.f32 0.0, %v711
        %v713 = vpop.f32.mrb[0].mxu0
        %714 = vdwg.mxu0
        %v715 = vsel %vm641, %v712, -inf
        %716 = vmax.xlane.f32.xlu0 %v715
        %v717 = vpop.xlane.xlu0 %716
        %v718 = vsub.f32 %v712, %v717
        %v719 = vmul.f32 %v718, 1.442695
        %v720 = vpow.pop %v719
        %v721 = vsel %vm641, %v720, 0.0
        %722 = vadd.xlane.f32.xlu0 %v721
        %v723 = vpop.xlane.xlu0 %722
        %v724 = vrcp.pop %v723
        %v725 = vmul.f32 %v720, %v724
        %v727 = vsel %vm641, %v605, 0
        %v730 = vsel %vm641, %v725, 0
        %732 = vmatprep.subr.mxu0 0.0
        %733 = vmatpush1.xpose.msra.mxu0 %v730
        %734 = vmatprep.subr.mxu0 0.0
        %735 = vmatpush1.xpose.msra.mxu0 0.0
        %736 = vmatprep.subr.mxu0 0.0
        %737 = vmatpush1.xpose.msra.mxu0 0.0
        %738 = vmatprep.subr.mxu0 0.0
        %739 = vmatpush1.xpose.msra.mxu0 0.0
        %740 = vmatprep.subr.mxu0 0.0
        %741 = vmatpush1.xpose.msra.mxu0 0.0
        %742 = vmatprep.subr.mxu0 0.0
        %743 = vmatpush1.xpose.msra.mxu0 0.0
        %744 = vmatprep.subr.mxu0 0.0
        %745 = vmatpush1.xpose.msra.mxu0 0.0
        %746 = vmatprep.subr.mxu0 0.0
        %747 = vmatpush1.xpose.msra.mxu0 0.0
        %748 = vmatprep.subr.mxu0 0.0
        %749 = vmatpush1.xpose.msra.mxu0 0.0
        %750 = vmatprep.subr.mxu0 0.0
        %751 = vmatpush1.xpose.msra.mxu0 0.0
        %752 = vmatprep.subr.mxu0 0.0
        %753 = vmatpush1.xpose.msra.mxu0 0.0
        %754 = vmatprep.subr.mxu0 0.0
        %755 = vmatpush1.xpose.msra.mxu0 0.0
        %756 = vmatprep.subr.mxu0 0.0
        %757 = vmatpush1.xpose.msra.mxu0 0.0
        %758 = vmatprep.subr.mxu0 0.0
        %759 = vmatpush1.xpose.msra.mxu0 0.0
        %760 = vmatprep.subr.mxu0 0.0
        %761 = vmatpush1.xpose.msra.mxu0 0.0
        %762 = vmatprep.subr.mxu0 0.0
        %763 = vmatpush1.xpose.msra.mxu0 0.0
        %764 = vmatprep.subr.mxu0 0.0
        %765 = vmatpush1.xpose.msra.mxu0 0.0
        %766 = vmatprep.subr.mxu0 0.0
        %767 = vmatpush1.xpose.msra.mxu0 0.0
        %768 = vmatprep.subr.mxu0 0.0
        %769 = vmatpush1.xpose.msra.mxu0 0.0
        %770 = vmatprep.subr.mxu0 0.0
        %771 = vmatpush1.xpose.msra.mxu0 0.0
        %772 = vmatprep.subr.mxu0 0.0
        %773 = vmatpush1.xpose.msra.mxu0 0.0
        %774 = vmatprep.subr.mxu0 0.0
        %775 = vmatpush1.xpose.msra.mxu0 0.0
        %776 = vmatprep.subr.mxu0 0.0
        %777 = vmatpush1.xpose.msra.mxu0 0.0
        %778 = vmatprep.subr.mxu0 0.0
        %779 = vmatpush1.xpose.msra.mxu0 0.0
        %780 = vmatprep.subr.mxu0 0.0
        %781 = vmatpush1.xpose.msra.mxu0 0.0
        %782 = vmatprep.subr.mxu0 0.0
        %783 = vmatpush1.xpose.msra.mxu0 0.0
        %784 = vmatprep.subr.mxu0 0.0
        %785 = vmatpush1.xpose.msra.mxu0 0.0
        %786 = vmatprep.subr.mxu0 0.0
        %787 = vmatpush1.xpose.msra.mxu0 0.0
        %788 = vmatprep.subr.mxu0 0.0
        %789 = vmatpush1.xpose.msra.mxu0 0.0
        %790 = vmatprep.subr.mxu0 0.0
        %791 = vmatpush1.xpose.msra.mxu0 0.0
        %792 = vmatprep.subr.mxu0 0.0
        %793 = vmatpush1.xpose.msra.mxu0 0.0
        %794 = vmatprep.subr.mxu0 0.0
        %795 = vmatpush1.xpose.msra.mxu0 0.0
        %796 = vmatprep.mubr.f32.mxu0 0.0
        %797 = vmatmul.mubr.f32.gmra.mrb[0].mxu0 %v727
        %v798 = vpop.f32.mrb[0].mxu0
        %v799 = vadd.f32 0.0, %v798
        %v800 = vpop.f32.mrb[0].mxu0
        %801 = vdwg.mxu0
        %802 = vxpose.xlu0.b32.start [1/16] %v598, 128
        %803 = vxpose.xlu0.b32.cont [2/16] 0.0, 128
        %804 = vxpose.xlu0.b32.cont [3/16] 0.0, 128
        %805 = vxpose.xlu0.b32.cont [4/16] 0.0, 128
        %806 = vxpose.xlu0.b32.cont [5/16] 0.0, 128
        %807 = vxpose.xlu0.b32.cont [6/16] 0.0, 128
        %808 = vxpose.xlu0.b32.cont [7/16] 0.0, 128
        %809 = vxpose.xlu0.b32.cont [8/16] 0.0, 128
        %810 = vxpose.xlu0.b32.cont [9/16] 0.0, 128
        %811 = vxpose.xlu0.b32.cont [10/16] 0.0, 128
        %812 = vxpose.xlu0.b32.cont [11/16] 0.0, 128
        %813 = vxpose.xlu0.b32.cont [12/16] 0.0, 128
        %814 = vxpose.xlu0.b32.cont [13/16] 0.0, 128
        %815 = vxpose.xlu0.b32.cont [14/16] 0.0, 128
        %816 = vxpose.xlu0.b32.cont [15/16] 0.0, 128
        %817 = vxpose.xlu0.b32.end [16/16] 0.0, 128
        %v818 = vpop.trf.xlu0
        %v819 = vpop.trf.xlu0
        %v820 = vpop.trf.xlu0
        %v821 = vpop.trf.xlu0
        %v822 = vpop.trf.xlu0
        %v823 = vpop.trf.xlu0
        %v824 = vpop.trf.xlu0
        %v825 = vpop.trf.xlu0
        %v826 = vpop.trf.xlu0
        %v827 = vpop.trf.xlu0
        %v828 = vpop.trf.xlu0
        %v829 = vpop.trf.xlu0
        %v830 = vpop.trf.xlu0
        %v831 = vpop.trf.xlu0
        %v832 = vpop.trf.xlu0
        %v833 = vpop.trf.xlu0
        %v835 = vsel %vm641, %v818, 0
        %837 = vmatprep.subr.mxu0 0.0
        %838 = vmatpush1.msra.mxu0 %v602
        %839 = vmatprep.subr.mxu0 0.0
        %840 = vmatpush1.msra.mxu0 0.0
        %841 = vmatprep.subr.mxu0 0.0
        %842 = vmatpush1.msra.mxu0 0.0
        %843 = vmatprep.subr.mxu0 0.0
        %844 = vmatpush1.msra.mxu0 0.0
        %845 = vmatprep.subr.mxu0 0.0
        %846 = vmatpush1.msra.mxu0 0.0
        %847 = vmatprep.subr.mxu0 0.0
        %848 = vmatpush1.msra.mxu0 0.0
        %849 = vmatprep.subr.mxu0 0.0
        %850 = vmatpush1.msra.mxu0 0.0
        %851 = vmatprep.subr.mxu0 0.0
        %852 = vmatpush1.msra.mxu0 0.0
        %853 = vmatprep.subr.mxu0 0.0
        %854 = vmatpush1.msra.mxu0 0.0
        %855 = vmatprep.subr.mxu0 0.0
        %856 = vmatpush1.msra.mxu0 0.0
        %857 = vmatprep.subr.mxu0 0.0
        %858 = vmatpush1.msra.mxu0 0.0
        %859 = vmatprep.subr.mxu0 0.0
        %860 = vmatpush1.msra.mxu0 0.0
        %861 = vmatprep.subr.mxu0 0.0
        %862 = vmatpush1.msra.mxu0 0.0
        %863 = vmatprep.subr.mxu0 0.0
        %864 = vmatpush1.msra.mxu0 0.0
        %865 = vmatprep.subr.mxu0 0.0
        %866 = vmatpush1.msra.mxu0 0.0
        %867 = vmatprep.subr.mxu0 0.0
        %868 = vmatpush1.msra.mxu0 0.0
        %869 = vmatprep.subr.mxu0 0.0
        %870 = vmatpush1.msra.mxu0 0.0
        %871 = vmatprep.subr.mxu0 0.0
        %872 = vmatpush1.msra.mxu0 0.0
        %873 = vmatprep.subr.mxu0 0.0
        %874 = vmatpush1.msra.mxu0 0.0
        %875 = vmatprep.subr.mxu0 0.0
        %876 = vmatpush1.msra.mxu0 0.0
        %877 = vmatprep.subr.mxu0 0.0
        %878 = vmatpush1.msra.mxu0 0.0
        %879 = vmatprep.subr.mxu0 0.0
        %880 = vmatpush1.msra.mxu0 0.0
        %881 = vmatprep.subr.mxu0 0.0
        %882 = vmatpush1.msra.mxu0 0.0
        %883 = vmatprep.subr.mxu0 0.0
        %884 = vmatpush1.msra.mxu0 0.0
        %885 = vmatprep.subr.mxu0 0.0
        %886 = vmatpush1.msra.mxu0 0.0
        %887 = vmatprep.subr.mxu0 0.0
        %888 = vmatpush1.msra.mxu0 0.0
        %889 = vmatprep.subr.mxu0 0.0
        %890 = vmatpush1.msra.mxu0 0.0
        %891 = vmatprep.subr.mxu0 0.0
        %892 = vmatpush1.msra.mxu0 0.0
        %893 = vmatprep.subr.mxu0 0.0
        %894 = vmatpush1.msra.mxu0 0.0
        %895 = vmatprep.subr.mxu0 0.0
        %896 = vmatpush1.msra.mxu0 0.0
        %897 = vmatprep.subr.mxu0 0.0
        %898 = vmatpush1.msra.mxu0 0.0
        %899 = vmatprep.subr.mxu0 0.0
        %900 = vmatpush1.msra.mxu0 0.0
        %901 = vmatprep.mubr.f32.mxu0 0.0
        %902 = vmatmul.mubr.f32.gmra.mrb[0].mxu0 %v835
        %v903 = vpop.f32.mrb[0].mxu0
        %v904 = vadd.f32 0.0, %v903
        %v905 = vpop.f32.mrb[0].mxu0
        %906 = vdwg.mxu0
        %v907 = vsel %vm641, %v904, -inf
        %908 = vmax.xlane.f32.xlu0 %v907
        %v909 = vpop.xlane.xlu0 %908
        %v910 = vsub.f32 %v904, %v909
        %v911 = vmul.f32 %v910, 1.442695
        %v912 = vpow.pop %v911
        %v913 = vsel %vm641, %v912, 0.0
        %914 = vadd.xlane.f32.xlu0 %v913
        %v915 = vpop.xlane.xlu0 %914
        %v916 = vrcp.pop %v915
        %v917 = vmul.f32 %v912, %v916
        %v919 = vsel %vm641, %v606, 0
        %v922 = vsel %vm641, %v917, 0
        %924 = vmatprep.subr.mxu0 0.0
        %925 = vmatpush1.xpose.msra.mxu0 %v922
        %926 = vmatprep.subr.mxu0 0.0
        %927 = vmatpush1.xpose.msra.mxu0 0.0
        %928 = vmatprep.subr.mxu0 0.0
        %929 = vmatpush1.xpose.msra.mxu0 0.0
        %930 = vmatprep.subr.mxu0 0.0
        %931 = vmatpush1.xpose.msra.mxu0 0.0
        %932 = vmatprep.subr.mxu0 0.0
        %933 = vmatpush1.xpose.msra.mxu0 0.0
        %934 = vmatprep.subr.mxu0 0.0
        %935 = vmatpush1.xpose.msra.mxu0 0.0
        %936 = vmatprep.subr.mxu0 0.0
        %937 = vmatpush1.xpose.msra.mxu0 0.0
        %938 = vmatprep.subr.mxu0 0.0
        %939 = vmatpush1.xpose.msra.mxu0 0.0
        %940 = vmatprep.subr.mxu0 0.0
        %941 = vmatpush1.xpose.msra.mxu0 0.0
        %942 = vmatprep.subr.mxu0 0.0
        %943 = vmatpush1.xpose.msra.mxu0 0.0
        %944 = vmatprep.subr.mxu0 0.0
        %945 = vmatpush1.xpose.msra.mxu0 0.0
        %946 = vmatprep.subr.mxu0 0.0
        %947 = vmatpush1.xpose.msra.mxu0 0.0
        %948 = vmatprep.subr.mxu0 0.0
        %949 = vmatpush1.xpose.msra.mxu0 0.0
        %950 = vmatprep.subr.mxu0 0.0
        %951 = vmatpush1.xpose.msra.mxu0 0.0
        %952 = vmatprep.subr.mxu0 0.0
        %953 = vmatpush1.xpose.msra.mxu0 0.0
        %954 = vmatprep.subr.mxu0 0.0
        %955 = vmatpush1.xpose.msra.mxu0 0.0
        %956 = vmatprep.subr.mxu0 0.0
        %957 = vmatpush1.xpose.msra.mxu0 0.0
        %958 = vmatprep.subr.mxu0 0.0
        %959 = vmatpush1.xpose.msra.mxu0 0.0
        %960 = vmatprep.subr.mxu0 0.0
        %961 = vmatpush1.xpose.msra.mxu0 0.0
        %962 = vmatprep.subr.mxu0 0.0
        %963 = vmatpush1.xpose.msra.mxu0 0.0
        %964 = vmatprep.subr.mxu0 0.0
        %965 = vmatpush1.xpose.msra.mxu0 0.0
        %966 = vmatprep.subr.mxu0 0.0
        %967 = vmatpush1.xpose.msra.mxu0 0.0
        %968 = vmatprep.subr.mxu0 0.0
        %969 = vmatpush1.xpose.msra.mxu0 0.0
        %970 = vmatprep.subr.mxu0 0.0
        %971 = vmatpush1.xpose.msra.mxu0 0.0
        %972 = vmatprep.subr.mxu0 0.0
        %973 = vmatpush1.xpose.msra.mxu0 0.0
        %974 = vmatprep.subr.mxu0 0.0
        %975 = vmatpush1.xpose.msra.mxu0 0.0
        %976 = vmatprep.subr.mxu0 0.0
        %977 = vmatpush1.xpose.msra.mxu0 0.0
        %978 = vmatprep.subr.mxu0 0.0
        %979 = vmatpush1.xpose.msra.mxu0 0.0
        %980 = vmatprep.subr.mxu0 0.0
        %981 = vmatpush1.xpose.msra.mxu0 0.0
        %982 = vmatprep.subr.mxu0 0.0
        %983 = vmatpush1.xpose.msra.mxu0 0.0
        %984 = vmatprep.subr.mxu0 0.0
        %985 = vmatpush1.xpose.msra.mxu0 0.0
        %986 = vmatprep.subr.mxu0 0.0
        %987 = vmatpush1.xpose.msra.mxu0 0.0
        %988 = vmatprep.mubr.f32.mxu0 0.0
        %989 = vmatmul.mubr.f32.gmra.mrb[0].mxu0 %v919
        %v990 = vpop.f32.mrb[0].mxu0
        %v991 = vadd.f32 0.0, %v990
        %v992 = vpop.f32.mrb[0].mxu0
        %993 = vdwg.mxu0
        %994 = vxpose.xlu0.b32.start [1/16] %v599, 128
        %995 = vxpose.xlu0.b32.cont [2/16] 0.0, 128
        %996 = vxpose.xlu0.b32.cont [3/16] 0.0, 128
        %997 = vxpose.xlu0.b32.cont [4/16] 0.0, 128
        %998 = vxpose.xlu0.b32.cont [5/16] 0.0, 128
        %999 = vxpose.xlu0.b32.cont [6/16] 0.0, 128
        %1000 = vxpose.xlu0.b32.cont [7/16] 0.0, 128
        %1001 = vxpose.xlu0.b32.cont [8/16] 0.0, 128
        %1002 = vxpose.xlu0.b32.cont [9/16] 0.0, 128
        %1003 = vxpose.xlu0.b32.cont [10/16] 0.0, 128
        %1004 = vxpose.xlu0.b32.cont [11/16] 0.0, 128
        %1005 = vxpose.xlu0.b32.cont [12/16] 0.0, 128
        %1006 = vxpose.xlu0.b32.cont [13/16] 0.0, 128
        %1007 = vxpose.xlu0.b32.cont [14/16] 0.0, 128
        %1008 = vxpose.xlu0.b32.cont [15/16] 0.0, 128
        %1009 = vxpose.xlu0.b32.end [16/16] 0.0, 128
        %v1010 = vpop.trf.xlu0
        %v1011 = vpop.trf.xlu0
        %v1012 = vpop.trf.xlu0
        %v1013 = vpop.trf.xlu0
        %v1014 = vpop.trf.xlu0
        %v1015 = vpop.trf.xlu0
        %v1016 = vpop.trf.xlu0
        %v1017 = vpop.trf.xlu0
        %v1018 = vpop.trf.xlu0
        %v1019 = vpop.trf.xlu0
        %v1020 = vpop.trf.xlu0
        %v1021 = vpop.trf.xlu0
        %v1022 = vpop.trf.xlu0
        %v1023 = vpop.trf.xlu0
        %v1024 = vpop.trf.xlu0
        %v1025 = vpop.trf.xlu0
        %v1027 = vsel %vm641, %v1010, 0
        %1029 = vmatprep.subr.mxu0 0.0
        %1030 = vmatpush1.msra.mxu0 %v603
        %1031 = vmatprep.subr.mxu0 0.0
        %1032 = vmatpush1.msra.mxu0 0.0
        %1033 = vmatprep.subr.mxu0 0.0
        %1034 = vmatpush1.msra.mxu0 0.0
        %1035 = vmatprep.subr.mxu0 0.0
        %1036 = vmatpush1.msra.mxu0 0.0
        %1037 = vmatprep.subr.mxu0 0.0
        %1038 = vmatpush1.msra.mxu0 0.0
        %1039 = vmatprep.subr.mxu0 0.0
        %1040 = vmatpush1.msra.mxu0 0.0
        %1041 = vmatprep.subr.mxu0 0.0
        %1042 = vmatpush1.msra.mxu0 0.0
        %1043 = vmatprep.subr.mxu0 0.0
        %1044 = vmatpush1.msra.mxu0 0.0
        %1045 = vmatprep.subr.mxu0 0.0
        %1046 = vmatpush1.msra.mxu0 0.0
        %1047 = vmatprep.subr.mxu0 0.0
        %1048 = vmatpush1.msra.mxu0 0.0
        %1049 = vmatprep.subr.mxu0 0.0
        %1050 = vmatpush1.msra.mxu0 0.0
        %1051 = vmatprep.subr.mxu0 0.0
        %1052 = vmatpush1.msra.mxu0 0.0
        %1053 = vmatprep.subr.mxu0 0.0
        %1054 = vmatpush1.msra.mxu0 0.0
        %1055 = vmatprep.subr.mxu0 0.0
        %1056 = vmatpush1.msra.mxu0 0.0
        %1057 = vmatprep.subr.mxu0 0.0
        %1058 = vmatpush1.msra.mxu0 0.0
        %1059 = vmatprep.subr.mxu0 0.0
        %1060 = vmatpush1.msra.mxu0 0.0
        %1061 = vmatprep.subr.mxu0 0.0
        %1062 = vmatpush1.msra.mxu0 0.0
        %1063 = vmatprep.subr.mxu0 0.0
        %1064 = vmatpush1.msra.mxu0 0.0
        %1065 = vmatprep.subr.mxu0 0.0
        %1066 = vmatpush1.msra.mxu0 0.0
        %1067 = vmatprep.subr.mxu0 0.0
        %1068 = vmatpush1.msra.mxu0 0.0
        %1069 = vmatprep.subr.mxu0 0.0
        %1070 = vmatpush1.msra.mxu0 0.0
        %1071 = vmatprep.subr.mxu0 0.0
        %1072 = vmatpush1.msra.mxu0 0.0
        %1073 = vmatprep.subr.mxu0 0.0
        %1074 = vmatpush1.msra.mxu0 0.0
        %1075 = vmatprep.subr.mxu0 0.0
        %1076 = vmatpush1.msra.mxu0 0.0
        %1077 = vmatprep.subr.mxu0 0.0
        %1078 = vmatpush1.msra.mxu0 0.0
        %1079 = vmatprep.subr.mxu0 0.0
        %1080 = vmatpush1.msra.mxu0 0.0
        %1081 = vmatprep.subr.mxu0 0.0
        %1082 = vmatpush1.msra.mxu0 0.0
        %1083 = vmatprep.subr.mxu0 0.0
        %1084 = vmatpush1.msra.mxu0 0.0
        %1085 = vmatprep.subr.mxu0 0.0
        %1086 = vmatpush1.msra.mxu0 0.0
        %1087 = vmatprep.subr.mxu0 0.0
        %1088 = vmatpush1.msra.mxu0 0.0
        %1089 = vmatprep.subr.mxu0 0.0
        %1090 = vmatpush1.msra.mxu0 0.0
        %1091 = vmatprep.subr.mxu0 0.0
        %1092 = vmatpush1.msra.mxu0 0.0
        %1093 = vmatprep.mubr.f32.mxu0 0.0
        %1094 = vmatmul.mubr.f32.gmra.mrb[0].mxu0 %v1027
        %v1095 = vpop.f32.mrb[0].mxu0
        %v1096 = vadd.f32 0.0, %v1095
        %v1097 = vpop.f32.mrb[0].mxu0
        %1098 = vdwg.mxu0
        %v1099 = vsel %vm641, %v1096, -inf
        %1100 = vmax.xlane.f32.xlu0 %v1099
        %v1101 = vpop.xlane.xlu0 %1100
        %v1102 = vsub.f32 %v1096, %v1101
        %v1103 = vmul.f32 %v1102, 1.442695
        %v1104 = vpow.pop %v1103
        %v1105 = vsel %vm641, %v1104, 0.0
        %1106 = vadd.xlane.f32.xlu0 %v1105
        %v1107 = vpop.xlane.xlu0 %1106
        %v1108 = vrcp.pop %v1107
        %v1109 = vmul.f32 %v1104, %v1108
        %v1111 = vsel %vm641, %v607, 0
        %v1114 = vsel %vm641, %v1109, 0
        %1116 = vmatprep.subr.mxu0 0.0
        %1117 = vmatpush1.xpose.msra.mxu0 %v1114
        %1118 = vmatprep.subr.mxu0 0.0
        %1119 = vmatpush1.xpose.msra.mxu0 0.0
        %1120 = vmatprep.subr.mxu0 0.0
        %1121 = vmatpush1.xpose.msra.mxu0 0.0
        %1122 = vmatprep.subr.mxu0 0.0
        %1123 = vmatpush1.xpose.msra.mxu0 0.0
        %1124 = vmatprep.subr.mxu0 0.0
        %1125 = vmatpush1.xpose.msra.mxu0 0.0
        %1126 = vmatprep.subr.mxu0 0.0
        %1127 = vmatpush1.xpose.msra.mxu0 0.0
        %1128 = vmatprep.subr.mxu0 0.0
        %1129 = vmatpush1.xpose.msra.mxu0 0.0
        %1130 = vmatprep.subr.mxu0 0.0
        %1131 = vmatpush1.xpose.msra.mxu0 0.0
        %1132 = vmatprep.subr.mxu0 0.0
        %1133 = vmatpush1.xpose.msra.mxu0 0.0
        %1134 = vmatprep.subr.mxu0 0.0
        %1135 = vmatpush1.xpose.msra.mxu0 0.0
        %1136 = vmatprep.subr.mxu0 0.0
        %1137 = vmatpush1.xpose.msra.mxu0 0.0
        %1138 = vmatprep.subr.mxu0 0.0
        %1139 = vmatpush1.xpose.msra.mxu0 0.0
        %1140 = vmatprep.subr.mxu0 0.0
        %1141 = vmatpush1.xpose.msra.mxu0 0.0
        %1142 = vmatprep.subr.mxu0 0.0
        %1143 = vmatpush1.xpose.msra.mxu0 0.0
        %1144 = vmatprep.subr.mxu0 0.0
        %1145 = vmatpush1.xpose.msra.mxu0 0.0
        %1146 = vmatprep.subr.mxu0 0.0
        %1147 = vmatpush1.xpose.msra.mxu0 0.0
        %1148 = vmatprep.subr.mxu0 0.0
        %1149 = vmatpush1.xpose.msra.mxu0 0.0
        %1150 = vmatprep.subr.mxu0 0.0
        %1151 = vmatpush1.xpose.msra.mxu0 0.0
        %1152 = vmatprep.subr.mxu0 0.0
        %1153 = vmatpush1.xpose.msra.mxu0 0.0
        %1154 = vmatprep.subr.mxu0 0.0
        %1155 = vmatpush1.xpose.msra.mxu0 0.0
        %1156 = vmatprep.subr.mxu0 0.0
        %1157 = vmatpush1.xpose.msra.mxu0 0.0
        %1158 = vmatprep.subr.mxu0 0.0
        %1159 = vmatpush1.xpose.msra.mxu0 0.0
        %1160 = vmatprep.subr.mxu0 0.0
        %1161 = vmatpush1.xpose.msra.mxu0 0.0
        %1162 = vmatprep.subr.mxu0 0.0
        %1163 = vmatpush1.xpose.msra.mxu0 0.0
        %1164 = vmatprep.subr.mxu0 0.0
        %1165 = vmatpush1.xpose.msra.mxu0 0.0
        %1166 = vmatprep.subr.mxu0 0.0
        %1167 = vmatpush1.xpose.msra.mxu0 0.0
        %1168 = vmatprep.subr.mxu0 0.0
        %1169 = vmatpush1.xpose.msra.mxu0 0.0
        %1170 = vmatprep.subr.mxu0 0.0
        %1171 = vmatpush1.xpose.msra.mxu0 0.0
        %1172 = vmatprep.subr.mxu0 0.0
        %1173 = vmatpush1.xpose.msra.mxu0 0.0
        %1174 = vmatprep.subr.mxu0 0.0
        %1175 = vmatpush1.xpose.msra.mxu0 0.0
        %1176 = vmatprep.subr.mxu0 0.0
        %1177 = vmatpush1.xpose.msra.mxu0 0.0
        %1178 = vmatprep.subr.mxu0 0.0
        %1179 = vmatpush1.xpose.msra.mxu0 0.0
        %1180 = vmatprep.mubr.f32.mxu0 0.0
        %1181 = vmatmul.mubr.f32.gmra.mrb[0].mxu0 %v1111
        %v1182 = vpop.f32.mrb[0].mxu0
        %v1183 = vadd.f32 0.0, %v1182
        %v1184 = vpop.f32.mrb[0].mxu0
        %1185 = vdwg.mxu0
        %1186 = vxpose.xlu0.b32.start [1/16] %v600, 128
        %1187 = vxpose.xlu0.b32.cont [2/16] 0.0, 128
        %1188 = vxpose.xlu0.b32.cont [3/16] 0.0, 128
        %1189 = vxpose.xlu0.b32.cont [4/16] 0.0, 128
        %1190 = vxpose.xlu0.b32.cont [5/16] 0.0, 128
        %1191 = vxpose.xlu0.b32.cont [6/16] 0.0, 128
        %1192 = vxpose.xlu0.b32.cont [7/16] 0.0, 128
        %1193 = vxpose.xlu0.b32.cont [8/16] 0.0, 128
        %1194 = vxpose.xlu0.b32.cont [9/16] 0.0, 128
        %1195 = vxpose.xlu0.b32.cont [10/16] 0.0, 128
        %1196 = vxpose.xlu0.b32.cont [11/16] 0.0, 128
        %1197 = vxpose.xlu0.b32.cont [12/16] 0.0, 128
        %1198 = vxpose.xlu0.b32.cont [13/16] 0.0, 128
        %1199 = vxpose.xlu0.b32.cont [14/16] 0.0, 128
        %1200 = vxpose.xlu0.b32.cont [15/16] 0.0, 128
        %1201 = vxpose.xlu0.b32.end [16/16] 0.0, 128
        %v1202 = vpop.trf.xlu0
        %v1203 = vpop.trf.xlu0
        %v1204 = vpop.trf.xlu0
        %v1205 = vpop.trf.xlu0
        %v1206 = vpop.trf.xlu0
        %v1207 = vpop.trf.xlu0
        %v1208 = vpop.trf.xlu0
        %v1209 = vpop.trf.xlu0
        %v1210 = vpop.trf.xlu0
        %v1211 = vpop.trf.xlu0
        %v1212 = vpop.trf.xlu0
        %v1213 = vpop.trf.xlu0
        %v1214 = vpop.trf.xlu0
        %v1215 = vpop.trf.xlu0
        %v1216 = vpop.trf.xlu0
        %v1217 = vpop.trf.xlu0
        %v1219 = vsel %vm641, %v1202, 0
        %1221 = vmatprep.subr.mxu0 0.0
        %1222 = vmatpush1.msra.mxu0 %v604
        %1223 = vmatprep.subr.mxu0 0.0
        %1224 = vmatpush1.msra.mxu0 0.0
        %1225 = vmatprep.subr.mxu0 0.0
        %1226 = vmatpush1.msra.mxu0 0.0
        %1227 = vmatprep.subr.mxu0 0.0
        %1228 = vmatpush1.msra.mxu0 0.0
        %1229 = vmatprep.subr.mxu0 0.0
        %1230 = vmatpush1.msra.mxu0 0.0
        %1231 = vmatprep.subr.mxu0 0.0
        %1232 = vmatpush1.msra.mxu0 0.0
        %1233 = vmatprep.subr.mxu0 0.0
        %1234 = vmatpush1.msra.mxu0 0.0
        %1235 = vmatprep.subr.mxu0 0.0
        %1236 = vmatpush1.msra.mxu0 0.0
        %1237 = vmatprep.subr.mxu0 0.0
        %1238 = vmatpush1.msra.mxu0 0.0
        %1239 = vmatprep.subr.mxu0 0.0
        %1240 = vmatpush1.msra.mxu0 0.0
        %1241 = vmatprep.subr.mxu0 0.0
        %1242 = vmatpush1.msra.mxu0 0.0
        %1243 = vmatprep.subr.mxu0 0.0
        %1244 = vmatpush1.msra.mxu0 0.0
        %1245 = vmatprep.subr.mxu0 0.0
        %1246 = vmatpush1.msra.mxu0 0.0
        %1247 = vmatprep.subr.mxu0 0.0
        %1248 = vmatpush1.msra.mxu0 0.0
        %1249 = vmatprep.subr.mxu0 0.0
        %1250 = vmatpush1.msra.mxu0 0.0
        %1251 = vmatprep.subr.mxu0 0.0
        %1252 = vmatpush1.msra.mxu0 0.0
        %1253 = vmatprep.subr.mxu0 0.0
        %1254 = vmatpush1.msra.mxu0 0.0
        %1255 = vmatprep.subr.mxu0 0.0
        %1256 = vmatpush1.msra.mxu0 0.0
        %1257 = vmatprep.subr.mxu0 0.0
        %1258 = vmatpush1.msra.mxu0 0.0
        %1259 = vmatprep.subr.mxu0 0.0
        %1260 = vmatpush1.msra.mxu0 0.0
        %1261 = vmatprep.subr.mxu0 0.0
        %1262 = vmatpush1.msra.mxu0 0.0
        %1263 = vmatprep.subr.mxu0 0.0
        %1264 = vmatpush1.msra.mxu0 0.0
        %1265 = vmatprep.subr.mxu0 0.0
        %1266 = vmatpush1.msra.mxu0 0.0
        %1267 = vmatprep.subr.mxu0 0.0
        %1268 = vmatpush1.msra.mxu0 0.0
        %1269 = vmatprep.subr.mxu0 0.0
        %1270 = vmatpush1.msra.mxu0 0.0
        %1271 = vmatprep.subr.mxu0 0.0
        %1272 = vmatpush1.msra.mxu0 0.0
        %1273 = vmatprep.subr.mxu0 0.0
        %1274 = vmatpush1.msra.mxu0 0.0
        %1275 = vmatprep.subr.mxu0 0.0
        %1276 = vmatpush1.msra.mxu0 0.0
        %1277 = vmatprep.subr.mxu0 0.0
        %1278 = vmatpush1.msra.mxu0 0.0
        %1279 = vmatprep.subr.mxu0 0.0
        %1280 = vmatpush1.msra.mxu0 0.0
        %1281 = vmatprep.subr.mxu0 0.0
        %1282 = vmatpush1.msra.mxu0 0.0
        %1283 = vmatprep.subr.mxu0 0.0
        %1284 = vmatpush1.msra.mxu0 0.0
        %1285 = vmatprep.mubr.f32.mxu0 0.0
        %1286 = vmatmul.mubr.f32.gmra.mrb[0].mxu0 %v1219
        %v1287 = vpop.f32.mrb[0].mxu0
        %v1288 = vadd.f32 0.0, %v1287
        %v1289 = vpop.f32.mrb[0].mxu0
        %1290 = vdwg.mxu0
        %v1291 = vsel %vm641, %v1288, -inf
        %1292 = vmax.xlane.f32.xlu0 %v1291
        %v1293 = vpop.xlane.xlu0 %1292
        %v1294 = vsub.f32 %v1288, %v1293
        %v1295 = vmul.f32 %v1294, 1.442695
        %v1296 = vpow.pop %v1295
        %v1297 = vsel %vm641, %v1296, 0.0
        %1298 = vadd.xlane.f32.xlu0 %v1297
        %v1299 = vpop.xlane.xlu0 %1298
        %v1300 = vrcp.pop %v1299
        %v1301 = vmul.f32 %v1296, %v1300
        %v1303 = vsel %vm641, %v608, 0
        %v1306 = vsel %vm641, %v1301, 0
        %1308 = vmatprep.subr.mxu0 0.0
        %1309 = vmatpush1.xpose.msra.mxu0 %v1306
        %1310 = vmatprep.subr.mxu0 0.0
        %1311 = vmatpush1.xpose.msra.mxu0 0.0
        %1312 = vmatprep.subr.mxu0 0.0
        %1313 = vmatpush1.xpose.msra.mxu0 0.0
        %1314 = vmatprep.subr.mxu0 0.0
        %1315 = vmatpush1.xpose.msra.mxu0 0.0
        %1316 = vmatprep.subr.mxu0 0.0
        %1317 = vmatpush1.xpose.msra.mxu0 0.0
        %1318 = vmatprep.subr.mxu0 0.0
        %1319 = vmatpush1.xpose.msra.mxu0 0.0
        %1320 = vmatprep.subr.mxu0 0.0
        %1321 = vmatpush1.xpose.msra.mxu0 0.0
        %1322 = vmatprep.subr.mxu0 0.0
        %1323 = vmatpush1.xpose.msra.mxu0 0.0
        %1324 = vmatprep.subr.mxu0 0.0
        %1325 = vmatpush1.xpose.msra.mxu0 0.0
        %1326 = vmatprep.subr.mxu0 0.0
        %1327 = vmatpush1.xpose.msra.mxu0 0.0
        %1328 = vmatprep.subr.mxu0 0.0
        %1329 = vmatpush1.xpose.msra.mxu0 0.0
        %1330 = vmatprep.subr.mxu0 0.0
        %1331 = vmatpush1.xpose.msra.mxu0 0.0
        %1332 = vmatprep.subr.mxu0 0.0
        %1333 = vmatpush1.xpose.msra.mxu0 0.0
        %1334 = vmatprep.subr.mxu0 0.0
        %1335 = vmatpush1.xpose.msra.mxu0 0.0
        %1336 = vmatprep.subr.mxu0 0.0
        %1337 = vmatpush1.xpose.msra.mxu0 0.0
        %1338 = vmatprep.subr.mxu0 0.0
        %1339 = vmatpush1.xpose.msra.mxu0 0.0
        %1340 = vmatprep.subr.mxu0 0.0
        %1341 = vmatpush1.xpose.msra.mxu0 0.0
        %1342 = vmatprep.subr.mxu0 0.0
        %1343 = vmatpush1.xpose.msra.mxu0 0.0
        %1344 = vmatprep.subr.mxu0 0.0
        %1345 = vmatpush1.xpose.msra.mxu0 0.0
        %1346 = vmatprep.subr.mxu0 0.0
        %1347 = vmatpush1.xpose.msra.mxu0 0.0
        %1348 = vmatprep.subr.mxu0 0.0
        %1349 = vmatpush1.xpose.msra.mxu0 0.0
        %1350 = vmatprep.subr.mxu0 0.0
        %1351 = vmatpush1.xpose.msra.mxu0 0.0
        %1352 = vmatprep.subr.mxu0 0.0
        %1353 = vmatpush1.xpose.msra.mxu0 0.0
        %1354 = vmatprep.subr.mxu0 0.0
        %1355 = vmatpush1.xpose.msra.mxu0 0.0
        %1356 = vmatprep.subr.mxu0 0.0
        %1357 = vmatpush1.xpose.msra.mxu0 0.0
        %1358 = vmatprep.subr.mxu0 0.0
        %1359 = vmatpush1.xpose.msra.mxu0 0.0
        %1360 = vmatprep.subr.mxu0 0.0
        %1361 = vmatpush1.xpose.msra.mxu0 0.0
        %1362 = vmatprep.subr.mxu0 0.0
        %1363 = vmatpush1.xpose.msra.mxu0 0.0
        %1364 = vmatprep.subr.mxu0 0.0
        %1365 = vmatpush1.xpose.msra.mxu0 0.0
        %1366 = vmatprep.subr.mxu0 0.0
        %1367 = vmatpush1.xpose.msra.mxu0 0.0
        %1368 = vmatprep.subr.mxu0 0.0
        %1369 = vmatpush1.xpose.msra.mxu0 0.0
        %1370 = vmatprep.subr.mxu0 0.0
        %1371 = vmatpush1.xpose.msra.mxu0 0.0
        %1372 = vmatprep.mubr.f32.mxu0 0.0
        %1373 = vmatmul.mubr.f32.gmra.mrb[0].mxu0 %v1303
        %v1374 = vpop.f32.mrb[0].mxu0
        %v1375 = vadd.f32 0.0, %v1374
        %v1376 = vpop.f32.mrb[0].mxu0
        %1377 = vdwg.mxu0
        %v1378 = vld [vmem:[#allocation9] sm:$0xff]
        %v1379 = vld [vmem:[#allocation9 + $0x8] sm:$0xff]
        %v1380 = vld [vmem:[#allocation10] sm:$0x1]
        %v1382 = vlaneseq
        %v1383 = vshrl.u32 %v1382, 7
        %v1384 = vsub.s32 0, %v1383
        %v1385 = vrot.slane %v1380, %v1384
        %1387 = vxpose.xlu0.b32.start [1/16] %v799, 128
        %1388 = vxpose.xlu0.b32.cont [2/16] %v991, 128
        %1389 = vxpose.xlu0.b32.cont [3/16] %v1183, 128
        %1390 = vxpose.xlu0.b32.cont [4/16] %v1375, 128
        %1391 = vxpose.xlu0.b32.cont [5/16] 0.0, 128
        %1392 = vxpose.xlu0.b32.cont [6/16] 0.0, 128
        %1393 = vxpose.xlu0.b32.cont [7/16] 0.0, 128
        %1394 = vxpose.xlu0.b32.cont [8/16] 0.0, 128
        %1395 = vxpose.xlu0.b32.cont [9/16] 0.0, 128
        %1396 = vxpose.xlu0.b32.cont [10/16] 0.0, 128
        %1397 = vxpose.xlu0.b32.cont [11/16] 0.0, 128
        %1398 = vxpose.xlu0.b32.cont [12/16] 0.0, 128
        %1399 = vxpose.xlu0.b32.cont [13/16] 0.0, 128
        %1400 = vxpose.xlu0.b32.cont [14/16] 0.0, 128
        %1401 = vxpose.xlu0.b32.cont [15/16] 0.0, 128
        %1402 = vxpose.xlu0.b32.end [16/16] 0.0, 128
        %v1403 = vpop.trf.xlu0
        %v1404 = vpop.trf.xlu0
        %v1405 = vpop.trf.xlu0
        %v1406 = vpop.trf.xlu0
        %v1407 = vpop.trf.xlu0
        %v1408 = vpop.trf.xlu0
        %v1409 = vpop.trf.xlu0
        %v1410 = vpop.trf.xlu0
        %v1411 = vpop.trf.xlu0
        %v1412 = vpop.trf.xlu0
        %v1413 = vpop.trf.xlu0
        %v1414 = vpop.trf.xlu0
        %v1415 = vpop.trf.xlu0
        %v1416 = vpop.trf.xlu0
        %v1417 = vpop.trf.xlu0
        %v1418 = vpop.trf.xlu0
        %v1420 = vsel %vm496, %v1403, 0
        %v1423 = vsel %vm496, %v1378, 0
        %v1426 = vsel %vm496, %v1379, 0
        %1428 = vmatprep.subr.mxu0 0.0
        %1429 = vmatpush1.xpose.msra.mxu0 %v1423
        %1430 = vmatprep.subr.mxu0 0.0
        %1431 = vmatpush1.xpose.msra.mxu0 %v1426
        %1432 = vmatprep.subr.mxu0 0.0
        %1433 = vmatpush1.xpose.msra.mxu0 0.0
        %1434 = vmatprep.subr.mxu0 0.0
        %1435 = vmatpush1.xpose.msra.mxu0 0.0
        %1436 = vmatprep.subr.mxu0 0.0
        %1437 = vmatpush1.xpose.msra.mxu0 0.0
        %1438 = vmatprep.subr.mxu0 0.0
        %1439 = vmatpush1.xpose.msra.mxu0 0.0
        %1440 = vmatprep.subr.mxu0 0.0
        %1441 = vmatpush1.xpose.msra.mxu0 0.0
        %1442 = vmatprep.subr.mxu0 0.0
        %1443 = vmatpush1.xpose.msra.mxu0 0.0
        %1444 = vmatprep.subr.mxu0 0.0
        %1445 = vmatpush1.xpose.msra.mxu0 0.0
        %1446 = vmatprep.subr.mxu0 0.0
        %1447 = vmatpush1.xpose.msra.mxu0 0.0
        %1448 = vmatprep.subr.mxu0 0.0
        %1449 = vmatpush1.xpose.msra.mxu0 0.0
        %1450 = vmatprep.subr.mxu0 0.0
        %1451 = vmatpush1.xpose.msra.mxu0 0.0
        %1452 = vmatprep.subr.mxu0 0.0
        %1453 = vmatpush1.xpose.msra.mxu0 0.0
        %1454 = vmatprep.subr.mxu0 0.0
        %1455 = vmatpush1.xpose.msra.mxu0 0.0
        %1456 = vmatprep.subr.mxu0 0.0
        %1457 = vmatpush1.xpose.msra.mxu0 0.0
        %1458 = vmatprep.subr.mxu0 0.0
        %1459 = vmatpush1.xpose.msra.mxu0 0.0
        %1460 = vmatprep.subr.mxu0 0.0
        %1461 = vmatpush1.xpose.msra.mxu0 0.0
        %1462 = vmatprep.subr.mxu0 0.0
        %1463 = vmatpush1.xpose.msra.mxu0 0.0
        %1464 = vmatprep.subr.mxu0 0.0
        %1465 = vmatpush1.xpose.msra.mxu0 0.0
        %1466 = vmatprep.subr.mxu0 0.0
        %1467 = vmatpush1.xpose.msra.mxu0 0.0
        %1468 = vmatprep.subr.mxu0 0.0
        %1469 = vmatpush1.xpose.msra.mxu0 0.0
        %1470 = vmatprep.subr.mxu0 0.0
        %1471 = vmatpush1.xpose.msra.mxu0 0.0
        %1472 = vmatprep.subr.mxu0 0.0
        %1473 = vmatpush1.xpose.msra.mxu0 0.0
        %1474 = vmatprep.subr.mxu0 0.0
        %1475 = vmatpush1.xpose.msra.mxu0 0.0
        %1476 = vmatprep.subr.mxu0 0.0
        %1477 = vmatpush1.xpose.msra.mxu0 0.0
        %1478 = vmatprep.subr.mxu0 0.0
        %1479 = vmatpush1.xpose.msra.mxu0 0.0
        %1480 = vmatprep.subr.mxu0 0.0
        %1481 = vmatpush1.xpose.msra.mxu0 0.0
        %1482 = vmatprep.subr.mxu0 0.0
        %1483 = vmatpush1.xpose.msra.mxu0 0.0
        %1484 = vmatprep.subr.mxu0 0.0
        %1485 = vmatpush1.xpose.msra.mxu0 0.0
        %1486 = vmatprep.subr.mxu0 0.0
        %1487 = vmatpush1.xpose.msra.mxu0 0.0
        %1488 = vmatprep.subr.mxu0 0.0
        %1489 = vmatpush1.xpose.msra.mxu0 0.0
        %1490 = vmatprep.subr.mxu0 0.0
        %1491 = vmatpush1.xpose.msra.mxu0 0.0
        %1492 = vmatprep.mubr.f32.mxu0 0.0
        %1493 = vmatmul.mubr.f32.gmra.mrb[0].mxu0 %v1420
        %v1494 = vpop.f32.mrb[0].mxu0
        %v1495 = vadd.f32 %v1385, %v1494
        %v1496 = vpop.f32.mrb[0].mxu0
        %1497 = vdwg.mxu0
        %vm1498 = vcmask 130048
        %1499 = vst.msk [vmem:[%s268] sm:$0xff] %vm1498, %v1495
        %s1500 = sand.u32 %s134, 1
        %s1501 = scalar_lea.sflag [#allocation6], %s1500
        %s1502 = sand.u32 %s134, 1
        %s1503 = smul.addr %s1502, 8
        %s1504 = scalar_lea.vmem [#allocation12], %s1503
        // Predicated region
        $region57: #{tpu_custom_call.1} parent=35 // pred_check
          %p1505 = pneg %p144
        $region58: #{tpu_custom_call.1} parent=35 // pred_check_branch
          %1507 = sbr.rel (%p1505) target = $region60
        $region59: #{tpu_custom_call.1} parent=35 // pred_region
          %s1509 = ssub.s32 128, 128
          %1510 = vsyncadd %s1501, %s1509
          %s1511 = sadd.s32 %s28, %s27
          %s1512 = smul.addr %s1511, 128
          %s1513 = scalar_lea.hbm %s4, %s1512
          %s1515 = sshll.u32 %s1504, 4
          %s1516 = int_to_ptr.vmem [resolvable:$true] %s1515
          %1518 = dma.vmem_to_hbm [thread:$0]  %s1516, 128, %s1513, %s1501
        $region60: #{tpu_custom_call.1} parent=35 // pred_fallthru
          _
      $region36: #{tpu_custom_call.1} parent=5 // pred_fallthru
        _
      %p1519 = scmp.le.s32.totalorder 2, %s18
      // Predicated region
      $region61: #{tpu_custom_call.1} parent=5 // pred_check
        %p1520 = pneg %p1519
      $region62: #{tpu_custom_call.1} parent=5 // pred_check_branch
        %1522 = sbr.rel (%p1520) target = $region64
      $region63: #{tpu_custom_call.1} parent=5 // pred_region
        %s1523 = ssub.s32 %s18, 2
        // Predicated region
        $region65: #{tpu_custom_call.1} parent=63 // pred_check
          %p1524 = pneg %p150
        $region66: #{tpu_custom_call.1} parent=63 // pred_check_branch
          %1526 = sbr.rel (%p1524) target = $region68
        $region67: #{tpu_custom_call.1} parent=63 // pred_region
          %s1527 = sand.u32 %s135, 1
          %s1528 = scalar_lea.sflag [#allocation6], %s1527
          %s1529 = sand.u32 %s135, 1
          %s1530 = smul.addr %s1529, 8
          %s1531 = scalar_lea.vmem [#allocation12], %s1530
          %1532 = dma.done %s1528, 128
        $region68: #{tpu_custom_call.1} parent=63 // pred_fallthru
          _
      $region64: #{tpu_custom_call.1} parent=5 // pred_fallthru
        _
    $region6: #{tpu_custom_call.1} parent=1 // loop_footer
      %s22 = sadd.s32 1, %s18
    $region7: #{tpu_custom_call.1} parent=1 // loop_footer_branch
      %17 = sbr.rel target = $region3
    $region8: #{tpu_custom_call.1} parent=1 // loop_exit
      _
    %1533 = vsyncpa [#allocation5], 1
    %s1534 = scalar_lea.sflag [#allocation5], 1
    %1535 = vsyncpa %s1534, 1
    %1536 = vsyncpa [#allocation8], 1
    %1537 = vsyncpa [#allocation11], 1
    %1538 = vsyncpa [#allocation6], 1
    %s1539 = scalar_lea.sflag [#allocation6], 1
    %1540 = vsyncpa %s1539, 1

</llo_original>
